<compile_context>
chip_gen: v5e
topology: v5e:2x2
jax: 0.10.0
libtpu: 0.0.40
codegen_flags: <defaults>
</compile_context>

<pallas_src>
import functools

import jax
import jax.numpy as jnp
from jax.experimental import pallas as pl
from jax.experimental.pallas import tpu as pltpu


def _round_up(x, m):
    return (x + m - 1) // m * m


def _decoder_kernel(x_ref, wih_ref, whh_ref, b_ref, wfc_ref, bfc_ref,
                    h0_ref, c0_ref,
                    y_ref, hT_ref, cT_ref,
                    gx_scr, hs_scr, h_scr, c_scr,
                    *, seq_len, chunk_len, batch_p, hidden, mm_dtype,
                    mask_tail, unroll):
    """One time-chunk of the decoder.

    x_ref   : (TC*Bp, in)   time-major activations for this chunk
    wih_ref : (in, Gp)      W_ih^T, gate-packed (gate g in cols [g*H,(g+1)*H))
    whh_ref : (H, Gp)       W_hh^T, gate-packed
    b_ref   : (1, Gp)       b_ih + b_hh, gate-packed
    wfc_ref : (H, Op)       W_fc^T, lane-padded to 128
    bfc_ref : (1, Op)
    h0/c0   : (Bp, H)       initial state
    y_ref   : (TC*Bp, Op)   lane-dense output block
    hT/cT   : (Bp, H)       final state (constant block, written each chunk)
    gx_scr  : (TC*Bp, Gp)   hoisted input projection (per chunk)
    hs_scr  : (TC*Bp, H)    stacked h_t for the hoisted FC head (per chunk)
    h_scr/c_scr : (Bp, H)   state carry across chunks
    """
    H, Bp, TC = hidden, batch_p, chunk_len
    t_chunk = pl.program_id(0)

    @pl.when(t_chunk == 0)
    def _init():
        h_scr[...] = h0_ref[...]
        c_scr[...] = c0_ref[...]

    # Hoisted input projection: one batched MXU matmul per chunk, bias once.
    gx_scr[...] = (
        jnp.dot(x_ref[...].astype(mm_dtype), wih_ref[...],
                preferred_element_type=jnp.float32)
        + b_ref[...])

    # Lane mask selecting the "g" (cell-candidate) gate inside the packed
    # 4*H gate block — hoisted out of the recurrence.
    lanes = jax.lax.broadcasted_iota(jnp.int32, (Bp, gx_scr.shape[1]), 1)
    g_lane = (lanes >= 2 * H) & (lanes < 3 * H)

    def step(tt, carry):
        h_prev, c_prev = carry
        row = pl.multiple_of(tt * Bp, 8)           # sublane-aligned slice
        # Recurrent weight streamed from VMEM each step (not kept live in
        # vregs across the loop).  TODO(synk): on v7x the MRB could accumulate
        # this matmul directly onto the gx block.
        gates = (gx_scr[pl.ds(row, Bp), :]
                 + jnp.dot(h_prev.astype(mm_dtype), whh_ref[...],
                           preferred_element_type=jnp.float32))
        # One sigmoid + one tanh over the packed gate block, lane-select for g.
        act = jnp.where(g_lane, jnp.tanh(gates), jax.nn.sigmoid(gates))
        i_g = act[:, 0 * H:1 * H]
        f_g = act[:, 1 * H:2 * H]
        g_g = act[:, 2 * H:3 * H]
        o_g = act[:, 3 * H:4 * H]
        c_new = f_g * c_prev + i_g * g_g
        h_new = o_g * jnp.tanh(c_new)
        hs_scr[pl.ds(row, Bp), :] = h_new
        if mask_tail:                               # only when T % chunk != 0
            keep = (t_chunk * TC + tt) < seq_len
            h_new = jnp.where(keep, h_new, h_prev)
            c_new = jnp.where(keep, c_new, c_prev)
        return h_new, c_new

    h_fin, c_fin = jax.lax.fori_loop(
        0, TC, step, (h_scr[...], c_scr[...]), unroll=unroll)

    # Carry state to the next chunk; final states stored exactly once to HBM.
    h_scr[...] = h_fin
    c_scr[...] = c_fin
    hT_ref[...] = h_fin.astype(hT_ref.dtype)
    cT_ref[...] = c_fin.astype(cT_ref.dtype)

    # Hoisted FC head: one batched matmul + one lane-dense store of y.
    y_ref[...] = (
        jnp.dot(hs_scr[...].astype(mm_dtype), wfc_ref[...],
                preferred_element_type=jnp.float32)
        + bfc_ref[...]).astype(y_ref.dtype)


def decoder_forward(x, params, h0=None, *, matmul_dtype=jnp.float32,
                    time_chunk=32):
    """x: (bs, T, out_size) batch_first, like the PyTorch module.
    Returns (y, (h, c)) with y:(bs, T, out_size), h,c:(1, bs, hidden).

    matmul_dtype=jnp.bfloat16 enables bf16 MXU operands (f32 accumulate,
    f32 elementwise) — the recommended setting on v6e/v7x at scale; default
    f32 keeps exact parity with the f32 PyTorch semantics."""
    bs, T, in_size = x.shape
    H = params["w_hh"].shape[1]          # w_hh: (4H, H)
    out_size = params["w_fc"].shape[0]   # w_fc: (out, H)
    f32 = jnp.float32
    mmdt = matmul_dtype

    Bp = _round_up(max(bs, 1), 8)        # sublane granule
    Gp = _round_up(4 * H, 128)           # packed-gate width, lane granule
    Op = _round_up(out_size, 128)        # lane-dense output width
    TC = min(T, time_chunk)              # time steps per grid step
    Tp = _round_up(T, TC)
    n_chunks = Tp // TC

    # ---- activations: pad batch & tail time, time-major, flatten to 2D ----
    x_p = jnp.zeros((Bp, Tp, in_size), f32).at[:bs, :T].set(x.astype(f32))
    x2d = jnp.transpose(x_p, (1, 0, 2)).reshape(Tp * Bp, in_size)

    # ---- weights: transposed, gate-packed (gate g -> cols [g*H,(g+1)*H)) ----
    w_ih_t = jnp.zeros((in_size, Gp), mmdt).at[:, :4 * H].set(
        params["w_ih"].T.astype(mmdt))
    w_hh_t = jnp.zeros((H, Gp), mmdt).at[:, :4 * H].set(
        params["w_hh"].T.astype(mmdt))
    bias = jnp.zeros((1, Gp), f32).at[0, :4 * H].set(
        (params["b_ih"] + params["b_hh"]).astype(f32))
    w_fc_t = jnp.zeros((H, Op), mmdt).at[:, :out_size].set(
        params["w_fc"].T.astype(mmdt))
    b_fc = jnp.zeros((1, Op), f32).at[0, :out_size].set(
        params["b_fc"].astype(f32))

    # ---- initial state (padded batch rows are sliced away afterwards) ----
    h_init = jnp.zeros((Bp, H), f32)
    c_init = jnp.zeros((Bp, H), f32)
    if h0 is not None:
        h_init = h_init.at[:bs].set(h0[0].reshape(bs, H).astype(f32))
        c_init = c_init.at[:bs].set(h0[1].reshape(bs, H).astype(f32))

    kernel = functools.partial(
        _decoder_kernel, seq_len=T, chunk_len=TC, batch_p=Bp, hidden=H,
        mm_dtype=mmdt, mask_tail=(Tp != T),
        unroll=(True if TC <= 16 else 8))

    grid_spec = pltpu.PrefetchScalarGridSpec(
        num_scalar_prefetch=0,
        grid=(n_chunks,),
        in_specs=[
            pl.BlockSpec((TC * Bp, in_size), lambda t: (t, 0)),   # x chunk
            pl.BlockSpec((in_size, Gp), lambda t: (0, 0)),        # W_ih^T
            pl.BlockSpec((H, Gp), lambda t: (0, 0)),              # W_hh^T
            pl.BlockSpec((1, Gp), lambda t: (0, 0)),              # bias
            pl.BlockSpec((H, Op), lambda t: (0, 0)),              # W_fc^T
            pl.BlockSpec((1, Op), lambda t: (0, 0)),              # b_fc
            pl.BlockSpec((Bp, H), lambda t: (0, 0)),              # h0
            pl.BlockSpec((Bp, H), lambda t: (0, 0)),              # c0
        ],
        out_specs=[
            pl.BlockSpec((TC * Bp, Op), lambda t: (t, 0)),        # y (lane-dense)
            pl.BlockSpec((Bp, H), lambda t: (0, 0)),              # h_T
            pl.BlockSpec((Bp, H), lambda t: (0, 0)),              # c_T
        ],
        scratch_shapes=[
            pltpu.VMEM((TC * Bp, Gp), jnp.float32),   # hoisted input proj
            pltpu.VMEM((TC * Bp, H), jnp.float32),    # stacked h_t (per chunk)
            pltpu.VMEM((Bp, H), jnp.float32),         # h carry
            pltpu.VMEM((Bp, H), jnp.float32),         # c carry
        ],
    )

    # Note: on v7x a leading batch-chunk grid axis marked "parallel" would let
    # the 2 TensorCores split the (independent) batch rows; omitted here since
    # the test batch fits one sublane tile.
    y2d, h_T, c_T = pl.pallas_call(
        kernel,
        grid_spec=grid_spec,
        out_shape=(
            jax.ShapeDtypeStruct((Tp * Bp, Op), jnp.float32),
            jax.ShapeDtypeStruct((Bp, H), jnp.float32),
            jax.ShapeDtypeStruct((Bp, H), jnp.float32),
        ),
        compiler_params=pltpu.CompilerParams(
            dimension_semantics=("arbitrary",),       # sequential time carry
            vmem_limit_bytes=32 * 1024 * 1024,
        ),
    )(x2d, w_ih_t, w_hh_t, bias, w_fc_t, b_fc, h_init, c_init)

    y = jnp.transpose(y2d.reshape(Tp, Bp, Op), (1, 0, 2))[:bs, :T, :out_size]
    h = h_T[:bs, :H][None]
    c = c_T[:bs, :H][None]
    return y, (h, c)


def _reference_forward(x, params, h0=None):
    """Pure-JAX reference mirroring PyTorch LSTM + Linear semantics."""
    bs, T, _ = x.shape
    H = params["w_hh"].shape[1]
    h = jnp.zeros((bs, H)) if h0 is None else h0[0][0]
    c = jnp.zeros((bs, H)) if h0 is None else h0[1][0]
    bias = params["b_ih"] + params["b_hh"]
    ys = []
    for t in range(T):
        g = x[:, t] @ params["w_ih"].T + h @ params["w_hh"].T + bias
        i = jax.nn.sigmoid(g[:, 0 * H:1 * H])
        f = jax.nn.sigmoid(g[:, 1 * H:2 * H])
        gg = jnp.tanh(g[:, 2 * H:3 * H])
        o = jax.nn.sigmoid(g[:, 3 * H:4 * H])
        c = f * c + i * gg
        h = o * jnp.tanh(c)
        ys.append(h @ params["w_fc"].T + params["b_fc"])
    return jnp.stack(ys, axis=1), (h[None], c[None])


def init_params(key, hidden_size, output_size):
    """Deterministic init matching PyTorch shapes (uniform ±1/sqrt(hidden))."""
    k = 1.0 / jnp.sqrt(hidden_size)
    keys = jax.random.split(key, 6)
    u = lambda kk, shape: jax.random.uniform(kk, shape, jnp.float32, -k, k)
    return {
        "w_ih": u(keys[0], (4 * hidden_size, output_size)),
        "w_hh": u(keys[1], (4 * hidden_size, hidden_size)),
        "b_ih": u(keys[2], (4 * hidden_size,)),
        "b_hh": u(keys[3], (4 * hidden_size,)),
        "w_fc": u(keys[4], (output_size, hidden_size)),
        "b_fc": u(keys[5], (output_size,)),
    }


if __name__ == "__main__":
    bs, T, hidden_size, output_size = 4, 8, 32, 16

    key = jax.random.PRNGKey(0)
    k_par, k_x, k_h, k_c = jax.random.split(key, 4)
    params = init_params(k_par, hidden_size, output_size)
    x = jax.random.normal(k_x, (bs, T, output_size), jnp.float32)

    # case 1: default zero initial state
    y, (h, c) = decoder_forward(x, params, h0=None)
    jax.block_until_ready((y, h, c))
    y_ref, (h_ref, c_ref) = _reference_forward(x, params, h0=None)
    assert y.shape == (bs, T, output_size) and h.shape == (1, bs, hidden_size)
    assert jnp.allclose(y, y_ref, atol=1e-4, rtol=1e-4)
    assert jnp.allclose(h, h_ref, atol=1e-4, rtol=1e-4)
    assert jnp.allclose(c, c_ref, atol=1e-4, rtol=1e-4)

    # case 2: explicit (h0, c0)
    h0 = (0.1 * jax.random.normal(k_h, (1, bs, hidden_size), jnp.float32),
          0.1 * jax.random.normal(k_c, (1, bs, hidden_size), jnp.float32))
    y2, (h2, c2) = decoder_forward(x, params, h0=h0)
    jax.block_until_ready((y2, h2, c2))
    y2_ref, (h2_ref, c2_ref) = _reference_forward(x, params, h0=h0)
    assert jnp.allclose(y2, y2_ref, atol=1e-4, rtol=1e-4)
    assert jnp.allclose(h2, h2_ref, atol=1e-4, rtol=1e-4)
    assert jnp.allclose(c2, c2_ref, atol=1e-4, rtol=1e-4)

    print("KERNEL_OK")
</pallas_src>

<mosaic_0001>
module attributes {stable_mosaic.version = 11 : i64} {
  func.func @_decoder_kernel(%arg0: i32, %arg1: memref<64x16xf32, #tpu.memory_space<vmem>>, %arg2: memref<16x128xf32, #tpu.memory_space<vmem>>, %arg3: memref<32x128xf32, #tpu.memory_space<vmem>>, %arg4: memref<1x128xf32, #tpu.memory_space<vmem>>, %arg5: memref<32x128xf32, #tpu.memory_space<vmem>>, %arg6: memref<1x128xf32, #tpu.memory_space<vmem>>, %arg7: memref<8x32xf32, #tpu.memory_space<vmem>>, %arg8: memref<8x32xf32, #tpu.memory_space<vmem>>, %arg9: memref<64x128xf32, #tpu.memory_space<vmem>>, %arg10: memref<8x32xf32, #tpu.memory_space<vmem>>, %arg11: memref<8x32xf32, #tpu.memory_space<vmem>>, %arg12: memref<64x128xf32, #tpu.memory_space<vmem>>, %arg13: memref<64x32xf32, #tpu.memory_space<vmem>>, %arg14: memref<8x32xf32, #tpu.memory_space<vmem>>, %arg15: memref<8x32xf32, #tpu.memory_space<vmem>>) attributes {dimension_semantics = [#tpu.dimension_semantics<arbitrary>], iteration_bounds = array<i64: 1>, scalar_prefetch = 0 : i64, scratch_operands = 4 : i64, tpu.core_type = #tpu.core_type<tc>, window_params = [{transform_indices = @transform_0, window_bounds = array<i64: 64, 16>}, {pipeline_mode = #tpu.pipeline_mode<synchronous>, transform_indices = @transform_1, window_bounds = array<i64: 16, 128>}, {pipeline_mode = #tpu.pipeline_mode<synchronous>, transform_indices = @transform_2, window_bounds = array<i64: 32, 128>}, {pipeline_mode = #tpu.pipeline_mode<synchronous>, transform_indices = @transform_3, window_bounds = array<i64: 1, 128>}, {pipeline_mode = #tpu.pipeline_mode<synchronous>, transform_indices = @transform_4, window_bounds = array<i64: 32, 128>}, {pipeline_mode = #tpu.pipeline_mode<synchronous>, transform_indices = @transform_5, window_bounds = array<i64: 1, 128>}, {pipeline_mode = #tpu.pipeline_mode<synchronous>, transform_indices = @transform_6, window_bounds = array<i64: 8, 32>}, {pipeline_mode = #tpu.pipeline_mode<synchronous>, transform_indices = @transform_7, window_bounds = array<i64: 8, 32>}, {transform_indices = @transform_8, window_bounds = array<i64: 64, 128>}, {pipeline_mode = #tpu.pipeline_mode<synchronous>, transform_indices = @transform_9, window_bounds = array<i64: 8, 32>}, {pipeline_mode = #tpu.pipeline_mode<synchronous>, transform_indices = @transform_10, window_bounds = array<i64: 8, 32>}]} {
    %c0_i32 = arith.constant 0 : i32
    %0 = arith.cmpi eq, %arg0, %c0_i32 : i32
    %1 = arith.extui %0 : i1 to i32
    %c0_i32_0 = arith.constant 0 : i32
    %2 = arith.cmpi ne, %1, %c0_i32_0 : i32
    scf.if %2 {
      %c0_86 = arith.constant 0 : index
      %c0_87 = arith.constant 0 : index
      %229 = vector.load %arg7[%c0_86, %c0_87] : memref<8x32xf32, #tpu.memory_space<vmem>>, vector<8x32xf32>
      %c0_88 = arith.constant 0 : index
      %c0_89 = arith.constant 0 : index
      %230 = vector.load %arg14[%c0_88, %c0_89] : memref<8x32xf32, #tpu.memory_space<vmem>>, vector<8x32xf32>
      tpu.vector_store %arg14[%c0_88, %c0_89], %229 {strides = array<i32>} : memref<8x32xf32, #tpu.memory_space<vmem>>, vector<8x32xf32>,
      %c0_90 = arith.constant 0 : index
      %c0_91 = arith.constant 0 : index
      %231 = vector.load %arg8[%c0_90, %c0_91] : memref<8x32xf32, #tpu.memory_space<vmem>>, vector<8x32xf32>
      %c0_92 = arith.constant 0 : index
      %c0_93 = arith.constant 0 : index
      %232 = vector.load %arg15[%c0_92, %c0_93] : memref<8x32xf32, #tpu.memory_space<vmem>>, vector<8x32xf32>
      tpu.vector_store %arg15[%c0_92, %c0_93], %231 {strides = array<i32>} : memref<8x32xf32, #tpu.memory_space<vmem>>, vector<8x32xf32>,
    } else {
    }
    %c0 = arith.constant 0 : index
    %c0_1 = arith.constant 0 : index
    %3 = vector.load %arg1[%c0, %c0_1] : memref<64x16xf32, #tpu.memory_space<vmem>>, vector<64x16xf32>
    %c0_2 = arith.constant 0 : index
    %c0_3 = arith.constant 0 : index
    %4 = vector.load %arg2[%c0_2, %c0_3] : memref<16x128xf32, #tpu.memory_space<vmem>>, vector<16x128xf32>
    %cst = arith.constant dense<0.000000e+00> : vector<64x128xf32>
    %5 = tpu.matmul %3, %4, %cst {dimension_numbers = #tpu.dot_dimension_numbers<[1], [0], [0], [1], [0, 0, 1, 1], [], []>} : vector<64x16xf32>, vector<16x128xf32>, vector<64x128xf32> -> vector<64x128xf32>
    %c0_4 = arith.constant 0 : index
    %c0_5 = arith.constant 0 : index
    %6 = vector.load %arg4[%c0_4, %c0_5] : memref<1x128xf32, #tpu.memory_space<vmem>>, vector<1x128xf32>
    %7 = vector.broadcast %6 : vector<1x128xf32> to vector<64x128xf32>
    %8 = arith.addf %5, %7 : vector<64x128xf32>
    %c0_6 = arith.constant 0 : index
    %c0_7 = arith.constant 0 : index
    %9 = vector.load %arg12[%c0_6, %c0_7] : memref<64x128xf32, #tpu.memory_space<vmem>>, vector<64x128xf32>
    tpu.vector_store %arg12[%c0_6, %c0_7], %8 {strides = array<i32>} : memref<64x128xf32, #tpu.memory_space<vmem>>, vector<64x128xf32>,
    %10 = tpu.iota {dimensions = array<i32: 1>} : vector<8x128xi32>
    %c64_i32 = arith.constant 64 : i32
    %11 = vector.broadcast %c64_i32 : i32 to vector<8x128xi32>
    %12 = arith.cmpi sge, %10, %11 : vector<8x128xi32>
    %c96_i32 = arith.constant 96 : i32
    %13 = vector.broadcast %c96_i32 : i32 to vector<8x128xi32>
    %14 = arith.cmpi slt, %10, %13 : vector<8x128xi32>
    %15 = arith.andi %12, %14 : vector<8x128xi1>
    %c0_8 = arith.constant 0 : index
    %c0_9 = arith.constant 0 : index
    %16 = vector.load %arg14[%c0_8, %c0_9] : memref<8x32xf32, #tpu.memory_space<vmem>>, vector<8x32xf32>
    %c0_10 = arith.constant 0 : index
    %c0_11 = arith.constant 0 : index
    %17 = vector.load %arg15[%c0_10, %c0_11] : memref<8x32xf32, #tpu.memory_space<vmem>>, vector<8x32xf32>
    %c0_i32_12 = arith.constant 0 : i32
    %c8_i32 = arith.constant 8 : i32
    %18 = arith.muli %c0_i32_12, %c8_i32 : i32
    %19 = tpu.assume_multiple %18, 8 : i32
    %20 = arith.index_cast %19 : i32 to index
    %c0_13 = arith.constant 0 : index
    %21 = vector.load %arg12[%20, %c0_13] : memref<64x128xf32, #tpu.memory_space<vmem>>, vector<8x128xf32>
    %c0_14 = arith.constant 0 : index
    %c0_15 = arith.constant 0 : index
    %22 = vector.load %arg3[%c0_14, %c0_15] : memref<32x128xf32, #tpu.memory_space<vmem>>, vector<32x128xf32>
    %cst_16 = arith.constant dense<0.000000e+00> : vector<8x128xf32>
    %23 = tpu.matmul %16, %22, %cst_16 {dimension_numbers = #tpu.dot_dimension_numbers<[1], [0], [0], [1], [0, 0, 1, 1], [], []>} : vector<8x32xf32>, vector<32x128xf32>, vector<8x128xf32> -> vector<8x128xf32>
    %24 = arith.addf %21, %23 : vector<8x128xf32>
    %25 = math.tanh %24 : vector<8x128xf32>
    %26 = arith.negf %24 : vector<8x128xf32>
    %27 = math.exp %26 : vector<8x128xf32>
    %cst_17 = arith.constant 1.000000e+00 : f32
    %28 = vector.broadcast %cst_17 : f32 to vector<8x128xf32>
    %29 = arith.addf %28, %27 : vector<8x128xf32>
    %30 = arith.divf %28, %29 : vector<8x128xf32>
    %31 = arith.select %15, %25, %30 : vector<8x128xi1>, vector<8x128xf32>
    %32 = vector.extract_strided_slice %31 {offsets = [0, 0], sizes = [8, 32], strides = [1, 1]} : vector<8x128xf32> to vector<8x32xf32>
    %33 = vector.extract_strided_slice %31 {offsets = [0, 32], sizes = [8, 32], strides = [1, 1]} : vector<8x128xf32> to vector<8x32xf32>
    %34 = vector.extract_strided_slice %31 {offsets = [0, 64], sizes = [8, 32], strides = [1, 1]} : vector<8x128xf32> to vector<8x32xf32>
    %35 = vector.extract_strided_slice %31 {offsets = [0, 96], sizes = [8, 32], strides = [1, 1]} : vector<8x128xf32> to vector<8x32xf32>
    %36 = arith.mulf %33, %17 : vector<8x32xf32>
    %37 = arith.mulf %32, %34 : vector<8x32xf32>
    %38 = arith.addf %36, %37 : vector<8x32xf32>
    %39 = math.tanh %38 : vector<8x32xf32>
    %40 = arith.mulf %35, %39 : vector<8x32xf32>
    %41 = arith.index_cast %19 : i32 to index
    %c0_18 = arith.constant 0 : index
    %42 = vector.load %arg13[%41, %c0_18] : memref<64x32xf32, #tpu.memory_space<vmem>>, vector<8x32xf32>
    tpu.vector_store %arg13[%41, %c0_18], %40 {strides = array<i32>} : memref<64x32xf32, #tpu.memory_space<vmem>>, vector<8x32xf32>,
    %c1_i32 = arith.constant 1 : i32
    %c8_i32_19 = arith.constant 8 : i32
    %43 = arith.muli %c1_i32, %c8_i32_19 : i32
    %44 = tpu.assume_multiple %43, 8 : i32
    %45 = arith.index_cast %44 : i32 to index
    %c0_20 = arith.constant 0 : index
    %46 = vector.load %arg12[%45, %c0_20] : memref<64x128xf32, #tpu.memory_space<vmem>>, vector<8x128xf32>
    %c0_21 = arith.constant 0 : index
    %c0_22 = arith.constant 0 : index
    %47 = vector.load %arg3[%c0_21, %c0_22] : memref<32x128xf32, #tpu.memory_space<vmem>>, vector<32x128xf32>
    %cst_23 = arith.constant dense<0.000000e+00> : vector<8x128xf32>
    %48 = tpu.matmul %40, %47, %cst_23 {dimension_numbers = #tpu.dot_dimension_numbers<[1], [0], [0], [1], [0, 0, 1, 1], [], []>} : vector<8x32xf32>, vector<32x128xf32>, vector<8x128xf32> -> vector<8x128xf32>
    %49 = arith.addf %46, %48 : vector<8x128xf32>
    %50 = math.tanh %49 : vector<8x128xf32>
    %51 = arith.negf %49 : vector<8x128xf32>
    %52 = math.exp %51 : vector<8x128xf32>
    %cst_24 = arith.constant 1.000000e+00 : f32
    %53 = vector.broadcast %cst_24 : f32 to vector<8x128xf32>
    %54 = arith.addf %53, %52 : vector<8x128xf32>
    %55 = arith.divf %53, %54 : vector<8x128xf32>
    %56 = arith.select %15, %50, %55 : vector<8x128xi1>, vector<8x128xf32>
    %57 = vector.extract_strided_slice %56 {offsets = [0, 0], sizes = [8, 32], strides = [1, 1]} : vector<8x128xf32> to vector<8x32xf32>
    %58 = vector.extract_strided_slice %56 {offsets = [0, 32], sizes = [8, 32], strides = [1, 1]} : vector<8x128xf32> to vector<8x32xf32>
    %59 = vector.extract_strided_slice %56 {offsets = [0, 64], sizes = [8, 32], strides = [1, 1]} : vector<8x128xf32> to vector<8x32xf32>
    %60 = vector.extract_strided_slice %56 {offsets = [0, 96], sizes = [8, 32], strides = [1, 1]} : vector<8x128xf32> to vector<8x32xf32>
    %61 = arith.mulf %58, %38 : vector<8x32xf32>
    %62 = arith.mulf %57, %59 : vector<8x32xf32>
    %63 = arith.addf %61, %62 : vector<8x32xf32>
    %64 = math.tanh %63 : vector<8x32xf32>
    %65 = arith.mulf %60, %64 : vector<8x32xf32>
    %66 = arith.index_cast %44 : i32 to index
    %c0_25 = arith.constant 0 : index
    %67 = vector.load %arg13[%66, %c0_25] : memref<64x32xf32, #tpu.memory_space<vmem>>, vector<8x32xf32>
    tpu.vector_store %arg13[%66, %c0_25], %65 {strides = array<i32>} : memref<64x32xf32, #tpu.memory_space<vmem>>, vector<8x32xf32>,
    %c2_i32 = arith.constant 2 : i32
    %c8_i32_26 = arith.constant 8 : i32
    %68 = arith.muli %c2_i32, %c8_i32_26 : i32
    %69 = tpu.assume_multiple %68, 8 : i32
    %70 = arith.index_cast %69 : i32 to index
    %c0_27 = arith.constant 0 : index
    %71 = vector.load %arg12[%70, %c0_27] : memref<64x128xf32, #tpu.memory_space<vmem>>, vector<8x128xf32>
    %c0_28 = arith.constant 0 : index
    %c0_29 = arith.constant 0 : index
    %72 = vector.load %arg3[%c0_28, %c0_29] : memref<32x128xf32, #tpu.memory_space<vmem>>, vector<32x128xf32>
    %cst_30 = arith.constant dense<0.000000e+00> : vector<8x128xf32>
    %73 = tpu.matmul %65, %72, %cst_30 {dimension_numbers = #tpu.dot_dimension_numbers<[1], [0], [0], [1], [0, 0, 1, 1], [], []>} : vector<8x32xf32>, vector<32x128xf32>, vector<8x128xf32> -> vector<8x128xf32>
    %74 = arith.addf %71, %73 : vector<8x128xf32>
    %75 = math.tanh %74 : vector<8x128xf32>
    %76 = arith.negf %74 : vector<8x128xf32>
    %77 = math.exp %76 : vector<8x128xf32>
    %cst_31 = arith.constant 1.000000e+00 : f32
    %78 = vector.broadcast %cst_31 : f32 to vector<8x128xf32>
    %79 = arith.addf %78, %77 : vector<8x128xf32>
    %80 = arith.divf %78, %79 : vector<8x128xf32>
    %81 = arith.select %15, %75, %80 : vector<8x128xi1>, vector<8x128xf32>
    %82 = vector.extract_strided_slice %81 {offsets = [0, 0], sizes = [8, 32], strides = [1, 1]} : vector<8x128xf32> to vector<8x32xf32>
    %83 = vector.extract_strided_slice %81 {offsets = [0, 32], sizes = [8, 32], strides = [1, 1]} : vector<8x128xf32> to vector<8x32xf32>
    %84 = vector.extract_strided_slice %81 {offsets = [0, 64], sizes = [8, 32], strides = [1, 1]} : vector<8x128xf32> to vector<8x32xf32>
    %85 = vector.extract_strided_slice %81 {offsets = [0, 96], sizes = [8, 32], strides = [1, 1]} : vector<8x128xf32> to vector<8x32xf32>
    %86 = arith.mulf %83, %63 : vector<8x32xf32>
    %87 = arith.mulf %82, %84 : vector<8x32xf32>
    %88 = arith.addf %86, %87 : vector<8x32xf32>
    %89 = math.tanh %88 : vector<8x32xf32>
    %90 = arith.mulf %85, %89 : vector<8x32xf32>
    %91 = arith.index_cast %69 : i32 to index
    %c0_32 = arith.constant 0 : index
    %92 = vector.load %arg13[%91, %c0_32] : memref<64x32xf32, #tpu.memory_space<vmem>>, vector<8x32xf32>
    tpu.vector_store %arg13[%91, %c0_32], %90 {strides = array<i32>} : memref<64x32xf32, #tpu.memory_space<vmem>>, vector<8x32xf32>,
    %c3_i32 = arith.constant 3 : i32
    %c8_i32_33 = arith.constant 8 : i32
    %93 = arith.muli %c3_i32, %c8_i32_33 : i32
    %94 = tpu.assume_multiple %93, 8 : i32
    %95 = arith.index_cast %94 : i32 to index
    %c0_34 = arith.constant 0 : index
    %96 = vector.load %arg12[%95, %c0_34] : memref<64x128xf32, #tpu.memory_space<vmem>>, vector<8x128xf32>
    %c0_35 = arith.constant 0 : index
    %c0_36 = arith.constant 0 : index
    %97 = vector.load %arg3[%c0_35, %c0_36] : memref<32x128xf32, #tpu.memory_space<vmem>>, vector<32x128xf32>
    %cst_37 = arith.constant dense<0.000000e+00> : vector<8x128xf32>
    %98 = tpu.matmul %90, %97, %cst_37 {dimension_numbers = #tpu.dot_dimension_numbers<[1], [0], [0], [1], [0, 0, 1, 1], [], []>} : vector<8x32xf32>, vector<32x128xf32>, vector<8x128xf32> -> vector<8x128xf32>
    %99 = arith.addf %96, %98 : vector<8x128xf32>
    %100 = math.tanh %99 : vector<8x128xf32>
    %101 = arith.negf %99 : vector<8x128xf32>
    %102 = math.exp %101 : vector<8x128xf32>
    %cst_38 = arith.constant 1.000000e+00 : f32
    %103 = vector.broadcast %cst_38 : f32 to vector<8x128xf32>
    %104 = arith.addf %103, %102 : vector<8x128xf32>
    %105 = arith.divf %103, %104 : vector<8x128xf32>
    %106 = arith.select %15, %100, %105 : vector<8x128xi1>, vector<8x128xf32>
    %107 = vector.extract_strided_slice %106 {offsets = [0, 0], sizes = [8, 32], strides = [1, 1]} : vector<8x128xf32> to vector<8x32xf32>
    %108 = vector.extract_strided_slice %106 {offsets = [0, 32], sizes = [8, 32], strides = [1, 1]} : vector<8x128xf32> to vector<8x32xf32>
    %109 = vector.extract_strided_slice %106 {offsets = [0, 64], sizes = [8, 32], strides = [1, 1]} : vector<8x128xf32> to vector<8x32xf32>
    %110 = vector.extract_strided_slice %106 {offsets = [0, 96], sizes = [8, 32], strides = [1, 1]} : vector<8x128xf32> to vector<8x32xf32>
    %111 = arith.mulf %108, %88 : vector<8x32xf32>
    %112 = arith.mulf %107, %109 : vector<8x32xf32>
    %113 = arith.addf %111, %112 : vector<8x32xf32>
    %114 = math.tanh %113 : vector<8x32xf32>
    %115 = arith.mulf %110, %114 : vector<8x32xf32>
    %116 = arith.index_cast %94 : i32 to index
    %c0_39 = arith.constant 0 : index
    %117 = vector.load %arg13[%116, %c0_39] : memref<64x32xf32, #tpu.memory_space<vmem>>, vector<8x32xf32>
    tpu.vector_store %arg13[%116, %c0_39], %115 {strides = array<i32>} : memref<64x32xf32, #tpu.memory_space<vmem>>, vector<8x32xf32>,
    %c4_i32 = arith.constant 4 : i32
    %c8_i32_40 = arith.constant 8 : i32
    %118 = arith.muli %c4_i32, %c8_i32_40 : i32
    %119 = tpu.assume_multiple %118, 8 : i32
    %120 = arith.index_cast %119 : i32 to index
    %c0_41 = arith.constant 0 : index
    %121 = vector.load %arg12[%120, %c0_41] : memref<64x128xf32, #tpu.memory_space<vmem>>, vector<8x128xf32>
    %c0_42 = arith.constant 0 : index
    %c0_43 = arith.constant 0 : index
    %122 = vector.load %arg3[%c0_42, %c0_43] : memref<32x128xf32, #tpu.memory_space<vmem>>, vector<32x128xf32>
    %cst_44 = arith.constant dense<0.000000e+00> : vector<8x128xf32>
    %123 = tpu.matmul %115, %122, %cst_44 {dimension_numbers = #tpu.dot_dimension_numbers<[1], [0], [0], [1], [0, 0, 1, 1], [], []>} : vector<8x32xf32>, vector<32x128xf32>, vector<8x128xf32> -> vector<8x128xf32>
    %124 = arith.addf %121, %123 : vector<8x128xf32>
    %125 = math.tanh %124 : vector<8x128xf32>
    %126 = arith.negf %124 : vector<8x128xf32>
    %127 = math.exp %126 : vector<8x128xf32>
    %cst_45 = arith.constant 1.000000e+00 : f32
    %128 = vector.broadcast %cst_45 : f32 to vector<8x128xf32>
    %129 = arith.addf %128, %127 : vector<8x128xf32>
    %130 = arith.divf %128, %129 : vector<8x128xf32>
    %131 = arith.select %15, %125, %130 : vector<8x128xi1>, vector<8x128xf32>
    %132 = vector.extract_strided_slice %131 {offsets = [0, 0], sizes = [8, 32], strides = [1, 1]} : vector<8x128xf32> to vector<8x32xf32>
    %133 = vector.extract_strided_slice %131 {offsets = [0, 32], sizes = [8, 32], strides = [1, 1]} : vector<8x128xf32> to vector<8x32xf32>
    %134 = vector.extract_strided_slice %131 {offsets = [0, 64], sizes = [8, 32], strides = [1, 1]} : vector<8x128xf32> to vector<8x32xf32>
    %135 = vector.extract_strided_slice %131 {offsets = [0, 96], sizes = [8, 32], strides = [1, 1]} : vector<8x128xf32> to vector<8x32xf32>
    %136 = arith.mulf %133, %113 : vector<8x32xf32>
    %137 = arith.mulf %132, %134 : vector<8x32xf32>
    %138 = arith.addf %136, %137 : vector<8x32xf32>
    %139 = math.tanh %138 : vector<8x32xf32>
    %140 = arith.mulf %135, %139 : vector<8x32xf32>
    %141 = arith.index_cast %119 : i32 to index
    %c0_46 = arith.constant 0 : index
    %142 = vector.load %arg13[%141, %c0_46] : memref<64x32xf32, #tpu.memory_space<vmem>>, vector<8x32xf32>
    tpu.vector_store %arg13[%141, %c0_46], %140 {strides = array<i32>} : memref<64x32xf32, #tpu.memory_space<vmem>>, vector<8x32xf32>,
    %c5_i32 = arith.constant 5 : i32
    %c8_i32_47 = arith.constant 8 : i32
    %143 = arith.muli %c5_i32, %c8_i32_47 : i32
    %144 = tpu.assume_multiple %143, 8 : i32
    %145 = arith.index_cast %144 : i32 to index
    %c0_48 = arith.constant 0 : index
    %146 = vector.load %arg12[%145, %c0_48] : memref<64x128xf32, #tpu.memory_space<vmem>>, vector<8x128xf32>
    %c0_49 = arith.constant 0 : index
    %c0_50 = arith.constant 0 : index
    %147 = vector.load %arg3[%c0_49, %c0_50] : memref<32x128xf32, #tpu.memory_space<vmem>>, vector<32x128xf32>
    %cst_51 = arith.constant dense<0.000000e+00> : vector<8x128xf32>
    %148 = tpu.matmul %140, %147, %cst_51 {dimension_numbers = #tpu.dot_dimension_numbers<[1], [0], [0], [1], [0, 0, 1, 1], [], []>} : vector<8x32xf32>, vector<32x128xf32>, vector<8x128xf32> -> vector<8x128xf32>
    %149 = arith.addf %146, %148 : vector<8x128xf32>
    %150 = math.tanh %149 : vector<8x128xf32>
    %151 = arith.negf %149 : vector<8x128xf32>
    %152 = math.exp %151 : vector<8x128xf32>
    %cst_52 = arith.constant 1.000000e+00 : f32
    %153 = vector.broadcast %cst_52 : f32 to vector<8x128xf32>
    %154 = arith.addf %153, %152 : vector<8x128xf32>
    %155 = arith.divf %153, %154 : vector<8x128xf32>
    %156 = arith.select %15, %150, %155 : vector<8x128xi1>, vector<8x128xf32>
    %157 = vector.extract_strided_slice %156 {offsets = [0, 0], sizes = [8, 32], strides = [1, 1]} : vector<8x128xf32> to vector<8x32xf32>
    %158 = vector.extract_strided_slice %156 {offsets = [0, 32], sizes = [8, 32], strides = [1, 1]} : vector<8x128xf32> to vector<8x32xf32>
    %159 = vector.extract_strided_slice %156 {offsets = [0, 64], sizes = [8, 32], strides = [1, 1]} : vector<8x128xf32> to vector<8x32xf32>
    %160 = vector.extract_strided_slice %156 {offsets = [0, 96], sizes = [8, 32], strides = [1, 1]} : vector<8x128xf32> to vector<8x32xf32>
    %161 = arith.mulf %158, %138 : vector<8x32xf32>
    %162 = arith.mulf %157, %159 : vector<8x32xf32>
    %163 = arith.addf %161, %162 : vector<8x32xf32>
    %164 = math.tanh %163 : vector<8x32xf32>
    %165 = arith.mulf %160, %164 : vector<8x32xf32>
    %166 = arith.index_cast %144 : i32 to index
    %c0_53 = arith.constant 0 : index
    %167 = vector.load %arg13[%166, %c0_53] : memref<64x32xf32, #tpu.memory_space<vmem>>, vector<8x32xf32>
    tpu.vector_store %arg13[%166, %c0_53], %165 {strides = array<i32>} : memref<64x32xf32, #tpu.memory_space<vmem>>, vector<8x32xf32>,
    %c6_i32 = arith.constant 6 : i32
    %c8_i32_54 = arith.constant 8 : i32
    %168 = arith.muli %c6_i32, %c8_i32_54 : i32
    %169 = tpu.assume_multiple %168, 8 : i32
    %170 = arith.index_cast %169 : i32 to index
    %c0_55 = arith.constant 0 : index
    %171 = vector.load %arg12[%170, %c0_55] : memref<64x128xf32, #tpu.memory_space<vmem>>, vector<8x128xf32>
    %c0_56 = arith.constant 0 : index
    %c0_57 = arith.constant 0 : index
    %172 = vector.load %arg3[%c0_56, %c0_57] : memref<32x128xf32, #tpu.memory_space<vmem>>, vector<32x128xf32>
    %cst_58 = arith.constant dense<0.000000e+00> : vector<8x128xf32>
    %173 = tpu.matmul %165, %172, %cst_58 {dimension_numbers = #tpu.dot_dimension_numbers<[1], [0], [0], [1], [0, 0, 1, 1], [], []>} : vector<8x32xf32>, vector<32x128xf32>, vector<8x128xf32> -> vector<8x128xf32>
    %174 = arith.addf %171, %173 : vector<8x128xf32>
    %175 = math.tanh %174 : vector<8x128xf32>
    %176 = arith.negf %174 : vector<8x128xf32>
    %177 = math.exp %176 : vector<8x128xf32>
    %cst_59 = arith.constant 1.000000e+00 : f32
    %178 = vector.broadcast %cst_59 : f32 to vector<8x128xf32>
    %179 = arith.addf %178, %177 : vector<8x128xf32>
    %180 = arith.divf %178, %179 : vector<8x128xf32>
    %181 = arith.select %15, %175, %180 : vector<8x128xi1>, vector<8x128xf32>
    %182 = vector.extract_strided_slice %181 {offsets = [0, 0], sizes = [8, 32], strides = [1, 1]} : vector<8x128xf32> to vector<8x32xf32>
    %183 = vector.extract_strided_slice %181 {offsets = [0, 32], sizes = [8, 32], strides = [1, 1]} : vector<8x128xf32> to vector<8x32xf32>
    %184 = vector.extract_strided_slice %181 {offsets = [0, 64], sizes = [8, 32], strides = [1, 1]} : vector<8x128xf32> to vector<8x32xf32>
    %185 = vector.extract_strided_slice %181 {offsets = [0, 96], sizes = [8, 32], strides = [1, 1]} : vector<8x128xf32> to vector<8x32xf32>
    %186 = arith.mulf %183, %163 : vector<8x32xf32>
    %187 = arith.mulf %182, %184 : vector<8x32xf32>
    %188 = arith.addf %186, %187 : vector<8x32xf32>
    %189 = math.tanh %188 : vector<8x32xf32>
    %190 = arith.mulf %185, %189 : vector<8x32xf32>
    %191 = arith.index_cast %169 : i32 to index
    %c0_60 = arith.constant 0 : index
    %192 = vector.load %arg13[%191, %c0_60] : memref<64x32xf32, #tpu.memory_space<vmem>>, vector<8x32xf32>
    tpu.vector_store %arg13[%191, %c0_60], %190 {strides = array<i32>} : memref<64x32xf32, #tpu.memory_space<vmem>>, vector<8x32xf32>,
    %c7_i32 = arith.constant 7 : i32
    %c8_i32_61 = arith.constant 8 : i32
    %193 = arith.muli %c7_i32, %c8_i32_61 : i32
    %194 = tpu.assume_multiple %193, 8 : i32
    %195 = arith.index_cast %194 : i32 to index
    %c0_62 = arith.constant 0 : index
    %196 = vector.load %arg12[%195, %c0_62] : memref<64x128xf32, #tpu.memory_space<vmem>>, vector<8x128xf32>
    %c0_63 = arith.constant 0 : index
    %c0_64 = arith.constant 0 : index
    %197 = vector.load %arg3[%c0_63, %c0_64] : memref<32x128xf32, #tpu.memory_space<vmem>>, vector<32x128xf32>
    %cst_65 = arith.constant dense<0.000000e+00> : vector<8x128xf32>
    %198 = tpu.matmul %190, %197, %cst_65 {dimension_numbers = #tpu.dot_dimension_numbers<[1], [0], [0], [1], [0, 0, 1, 1], [], []>} : vector<8x32xf32>, vector<32x128xf32>, vector<8x128xf32> -> vector<8x128xf32>
    %199 = arith.addf %196, %198 : vector<8x128xf32>
    %200 = math.tanh %199 : vector<8x128xf32>
    %201 = arith.negf %199 : vector<8x128xf32>
    %202 = math.exp %201 : vector<8x128xf32>
    %cst_66 = arith.constant 1.000000e+00 : f32
    %203 = vector.broadcast %cst_66 : f32 to vector<8x128xf32>
    %204 = arith.addf %203, %202 : vector<8x128xf32>
    %205 = arith.divf %203, %204 : vector<8x128xf32>
    %206 = arith.select %15, %200, %205 : vector<8x128xi1>, vector<8x128xf32>
    %207 = vector.extract_strided_slice %206 {offsets = [0, 0], sizes = [8, 32], strides = [1, 1]} : vector<8x128xf32> to vector<8x32xf32>
    %208 = vector.extract_strided_slice %206 {offsets = [0, 32], sizes = [8, 32], strides = [1, 1]} : vector<8x128xf32> to vector<8x32xf32>
    %209 = vector.extract_strided_slice %206 {offsets = [0, 64], sizes = [8, 32], strides = [1, 1]} : vector<8x128xf32> to vector<8x32xf32>
    %210 = vector.extract_strided_slice %206 {offsets = [0, 96], sizes = [8, 32], strides = [1, 1]} : vector<8x128xf32> to vector<8x32xf32>
    %211 = arith.mulf %208, %188 : vector<8x32xf32>
    %212 = arith.mulf %207, %209 : vector<8x32xf32>
    %213 = arith.addf %211, %212 : vector<8x32xf32>
    %214 = math.tanh %213 : vector<8x32xf32>
    %215 = arith.mulf %210, %214 : vector<8x32xf32>
    %216 = arith.index_cast %194 : i32 to index
    %c0_67 = arith.constant 0 : index
    %217 = vector.load %arg13[%216, %c0_67] : memref<64x32xf32, #tpu.memory_space<vmem>>, vector<8x32xf32>
    tpu.vector_store %arg13[%216, %c0_67], %215 {strides = array<i32>} : memref<64x32xf32, #tpu.memory_space<vmem>>, vector<8x32xf32>,
    %c8_i32_68 = arith.constant 8 : i32
    %c0_69 = arith.constant 0 : index
    %c0_70 = arith.constant 0 : index
    %218 = vector.load %arg14[%c0_69, %c0_70] : memref<8x32xf32, #tpu.memory_space<vmem>>, vector<8x32xf32>
    tpu.vector_store %arg14[%c0_69, %c0_70], %215 {strides = array<i32>} : memref<8x32xf32, #tpu.memory_space<vmem>>, vector<8x32xf32>,
    %c0_71 = arith.constant 0 : index
    %c0_72 = arith.constant 0 : index
    %219 = vector.load %arg15[%c0_71, %c0_72] : memref<8x32xf32, #tpu.memory_space<vmem>>, vector<8x32xf32>
    tpu.vector_store %arg15[%c0_71, %c0_72], %213 {strides = array<i32>} : memref<8x32xf32, #tpu.memory_space<vmem>>, vector<8x32xf32>,
    %c0_73 = arith.constant 0 : index
    %c0_74 = arith.constant 0 : index
    %220 = vector.load %arg10[%c0_73, %c0_74] : memref<8x32xf32, #tpu.memory_space<vmem>>, vector<8x32xf32>
    tpu.vector_store %arg10[%c0_73, %c0_74], %215 {strides = array<i32>} : memref<8x32xf32, #tpu.memory_space<vmem>>, vector<8x32xf32>,
    %c0_75 = arith.constant 0 : index
    %c0_76 = arith.constant 0 : index
    %221 = vector.load %arg11[%c0_75, %c0_76] : memref<8x32xf32, #tpu.memory_space<vmem>>, vector<8x32xf32>
    tpu.vector_store %arg11[%c0_75, %c0_76], %213 {strides = array<i32>} : memref<8x32xf32, #tpu.memory_space<vmem>>, vector<8x32xf32>,
    %c0_77 = arith.constant 0 : index
    %c0_78 = arith.constant 0 : index
    %222 = vector.load %arg13[%c0_77, %c0_78] : memref<64x32xf32, #tpu.memory_space<vmem>>, vector<64x32xf32>
    %c0_79 = arith.constant 0 : index
    %c0_80 = arith.constant 0 : index
    %223 = vector.load %arg5[%c0_79, %c0_80] : memref<32x128xf32, #tpu.memory_space<vmem>>, vector<32x128xf32>
    %cst_81 = arith.constant dense<0.000000e+00> : vector<64x128xf32>
    %224 = tpu.matmul %222, %223, %cst_81 {dimension_numbers = #tpu.dot_dimension_numbers<[1], [0], [0], [1], [0, 0, 1, 1], [], []>} : vector<64x32xf32>, vector<32x128xf32>, vector<64x128xf32> -> vector<64x128xf32>
    %c0_82 = arith.constant 0 : index
    %c0_83 = arith.constant 0 : index
    %225 = vector.load %arg6[%c0_82, %c0_83] : memref<1x128xf32, #tpu.memory_space<vmem>>, vector<1x128xf32>
    %226 = vector.broadcast %225 : vector<1x128xf32> to vector<64x128xf32>
    %227 = arith.addf %224, %226 : vector<64x128xf32>
    %c0_84 = arith.constant 0 : index
    %c0_85 = arith.constant 0 : index
    %228 = vector.load %arg9[%c0_84, %c0_85] : memref<64x128xf32, #tpu.memory_space<vmem>>, vector<64x128xf32>
    tpu.vector_store %arg9[%c0_84, %c0_85], %227 {strides = array<i32>} : memref<64x128xf32, #tpu.memory_space<vmem>>, vector<64x128xf32>,
    return
  }
  func.func @transform_0(%arg0: i32) -> (i32, i32) {
    %c0_i32 = arith.constant 0 : i32
    %c0_i32_0 = arith.constant 0 : i32
    return %arg0, %c0_i32 : i32, i32
  }
  func.func @transform_1(%arg0: i32) -> (i32, i32) {
    %c0_i32 = arith.constant 0 : i32
    %c0_i32_0 = arith.constant 0 : i32
    %c0_i32_1 = arith.constant 0 : i32
    return %c0_i32, %c0_i32_0 : i32, i32
  }
  func.func @transform_2(%arg0: i32) -> (i32, i32) {
    %c0_i32 = arith.constant 0 : i32
    %c0_i32_0 = arith.constant 0 : i32
    %c0_i32_1 = arith.constant 0 : i32
    return %c0_i32, %c0_i32_0 : i32, i32
  }
  func.func @transform_3(%arg0: i32) -> (i32, i32) {
    %c0_i32 = arith.constant 0 : i32
    %c0_i32_0 = arith.constant 0 : i32
    %c0_i32_1 = arith.constant 0 : i32
    return %c0_i32, %c0_i32_0 : i32, i32
  }
  func.func @transform_4(%arg0: i32) -> (i32, i32) {
    %c0_i32 = arith.constant 0 : i32
    %c0_i32_0 = arith.constant 0 : i32
    %c0_i32_1 = arith.constant 0 : i32
    return %c0_i32, %c0_i32_0 : i32, i32
  }
  func.func @transform_5(%arg0: i32) -> (i32, i32) {
    %c0_i32 = arith.constant 0 : i32
    %c0_i32_0 = arith.constant 0 : i32
    %c0_i32_1 = arith.constant 0 : i32
    return %c0_i32, %c0_i32_0 : i32, i32
  }
  func.func @transform_6(%arg0: i32) -> (i32, i32) {
    %c0_i32 = arith.constant 0 : i32
    %c0_i32_0 = arith.constant 0 : i32
    %c0_i32_1 = arith.constant 0 : i32
    return %c0_i32, %c0_i32_0 : i32, i32
  }
  func.func @transform_7(%arg0: i32) -> (i32, i32) {
    %c0_i32 = arith.constant 0 : i32
    %c0_i32_0 = arith.constant 0 : i32
    %c0_i32_1 = arith.constant 0 : i32
    return %c0_i32, %c0_i32_0 : i32, i32
  }
  func.func @transform_8(%arg0: i32) -> (i32, i32) {
    %c0_i32 = arith.constant 0 : i32
    %c0_i32_0 = arith.constant 0 : i32
    return %arg0, %c0_i32 : i32, i32
  }
  func.func @transform_9(%arg0: i32) -> (i32, i32) {
    %c0_i32 = arith.constant 0 : i32
    %c0_i32_0 = arith.constant 0 : i32
    %c0_i32_1 = arith.constant 0 : i32
    return %c0_i32, %c0_i32_0 : i32, i32
  }
  func.func @transform_10(%arg0: i32) -> (i32, i32) {
    %c0_i32 = arith.constant 0 : i32
    %c0_i32_0 = arith.constant 0 : i32
    %c0_i32_1 = arith.constant 0 : i32
    return %c0_i32, %c0_i32_0 : i32, i32
  }
}

</mosaic_0001>

<llo_original>
// kernel: tpu_custom_call.1
$region0: #{tpu_custom_call.1}
  #allocation0 [shape = 'u32[]', space=smem, size = 0x4, offset = 0x4, fixed_abs, tag = 'smem constant byte address 0x4 - core index']
  #allocation1 [shape = 'u32[72,128]{1,0:T(1,128)}', space=vmem, size = 0x9000, scoped, tag = 'internal scratch']
  #allocation2 [shape = 'f32[64,128]{1,0:T(8,128)}', space=vmem, size = 0x8000, scoped, tag = 'scratch operand']
  #allocation3 [shape = 'f32[64,32]{1,0:T(8,128)}', space=vmem, size = 0x8000, scoped, tag = 'scratch operand']
  #allocation4 [shape = 'f32[8,32]{1,0:T(8,128)}', space=vmem, size = 0x1000, scoped, tag = 'scratch operand']
  #allocation5 [shape = 'f32[8,32]{1,0:T(8,128)}', space=vmem, size = 0x1000, scoped, tag = 'scratch operand']
  %s0 = inlined_call_operand.vmem [shape: f32[64,16], index: 0, kind: input, shape index: {}]
  %s1 = inlined_call_operand.vmem [shape: f32[16,128], index: 1, kind: input, shape index: {}]
  %s2 = inlined_call_operand.vmem [shape: f32[32,128], index: 2, kind: input, shape index: {}]
  %s3 = inlined_call_operand.vmem [shape: f32[1,128], index: 3, kind: input, shape index: {}]
  %s4 = inlined_call_operand.vmem [shape: f32[32,128], index: 4, kind: input, shape index: {}]
  %s5 = inlined_call_operand.vmem [shape: f32[1,128], index: 5, kind: input, shape index: {}]
  %s6 = inlined_call_operand.hbm [shape: f32[8,32], index: 6, kind: input, shape index: {}]
  %s7 = inlined_call_operand.hbm [shape: f32[8,32], index: 7, kind: input, shape index: {}]
  %s8 = inlined_call_operand.hbm [shape: f32[64,128], index: 8, kind: output, shape index: {0}]
  %s9 = inlined_call_operand.hbm [shape: f32[8,32], index: 9, kind: output, shape index: {1}]
  %s10 = inlined_call_operand.hbm [shape: f32[8,32], index: 10, kind: output, shape index: {2}]
  %11 = xla_tuple %s8, %s9, %s10
  %s12 = sld [smem:[#allocation0]]
  $region70: #{tpu_custom_call.1} parent=0
    _
  %s14 = ssub.s32 1, %s12
  %s15 = scalar_select 0, %s14, %s12
  $region1: #{tpu_custom_call.1} parent=0
    #allocation6 [shape = 'u8[4096]{0}', space=vmem, size = 0x1000, scoped, tag = 'input window, operand 6, single buffered']
    #allocation7 [shape = 's32[1]{0}', space=sflag, size = 0x4, scoped, tag = 'scoped memory for tpu_custom_call.1']
    #allocation8 [shape = 's32[1]{0}', space=sflag, size = 0x4, scoped, tag = 'scoped memory for tpu_custom_call.1']
    #allocation9 [shape = 'u8[4096]{0}', space=vmem, size = 0x1000, scoped, tag = 'input window, operand 7, single buffered']
    #allocation10 [shape = 's32[1]{0}', space=sflag, size = 0x4, scoped, tag = 'scoped memory for tpu_custom_call.1']
    #allocation11 [shape = 'u8[32768]{0}', space=vmem, size = 0x8000, scoped, tag = 'output window, operand 0, single buffered']
    #allocation12 [shape = 'u8[4096]{0}', space=vmem, size = 0x1000, scoped, tag = 'output window, operand 1, single buffered']
    #allocation13 [shape = 's32[1]{0}', space=sflag, size = 0x4, scoped, tag = 'scoped memory for tpu_custom_call.1']
    #allocation14 [shape = 'u8[4096]{0}', space=vmem, size = 0x1000, scoped, tag = 'output window, operand 2, single buffered']
    %16 = vsyncpa [#allocation7], 0
    %17 = vsyncpa [#allocation10], 0
    %18 = vsyncpa [#allocation8], 0
    %19 = vsyncpa [#allocation13], 0
    // Predicated region
    $region2: #{tpu_custom_call.1} parent=1 // pred_check
      _
    $region3: #{tpu_custom_call.1} parent=1 // pred_check_branch
      %21 = sbr.rel (0) target = $region5
    $region4: #{tpu_custom_call.1} parent=1 // pred_region
      _
    $region5: #{tpu_custom_call.1} parent=1 // pred_fallthru
      _
    // Predicated region
    $region6: #{tpu_custom_call.1} parent=1 // pred_check
      _
    $region7: #{tpu_custom_call.1} parent=1 // pred_check_branch
      %23 = sbr.rel (0) target = $region9
    $region8: #{tpu_custom_call.1} parent=1 // pred_region
      _
    $region9: #{tpu_custom_call.1} parent=1 // pred_fallthru
      _
    // Predicated region
    $region10: #{tpu_custom_call.1} parent=1 // pred_check
      _
    $region11: #{tpu_custom_call.1} parent=1 // pred_check_branch
      %25 = sbr.rel (0) target = $region13
    $region12: #{tpu_custom_call.1} parent=1 // pred_region
      _
    $region13: #{tpu_custom_call.1} parent=1 // pred_fallthru
      _
    // Predicated region
    $region14: #{tpu_custom_call.1} parent=1 // pred_check
      _
    $region15: #{tpu_custom_call.1} parent=1 // pred_check_branch
      %27 = sbr.rel (0) target = $region17
    $region16: #{tpu_custom_call.1} parent=1 // pred_region
      _
    $region17: #{tpu_custom_call.1} parent=1 // pred_fallthru
      _
    // Predicated region
    $region18: #{tpu_custom_call.1} parent=1 // pred_check
      _
    $region19: #{tpu_custom_call.1} parent=1 // pred_check_branch
      %29 = sbr.rel (0) target = $region21
    $region20: #{tpu_custom_call.1} parent=1 // pred_region
      _
    $region21: #{tpu_custom_call.1} parent=1 // pred_fallthru
      _
    // Predicated region
    $region22: #{tpu_custom_call.1} parent=1 // pred_check
      _
    $region23: #{tpu_custom_call.1} parent=1 // pred_check_branch
      %31 = sbr.rel (0) target = $region25
    $region24: #{tpu_custom_call.1} parent=1 // pred_region
      _
    $region25: #{tpu_custom_call.1} parent=1 // pred_fallthru
      _
    // Predicated region
    $region26: #{tpu_custom_call.1} parent=1 // pred_check
      _
    $region27: #{tpu_custom_call.1} parent=1 // pred_check_branch
      %33 = sbr.rel (0) target = $region29
    $region28: #{tpu_custom_call.1} parent=1 // pred_region
      %35 = vsyncadd [#allocation7], 0
      %s37 = sshll.u32 %s6, 4
      %s38 = int_to_ptr.hbm [resolvable:$true] %s37
      %s39 = sshll.u32 [#allocation6], 4
      %s40 = int_to_ptr.vmem [resolvable:$true] %s39
      %42 = dma.hbm_to_vmem [thread:$0]  %s38, 128, %s40, [#allocation7]
    $region29: #{tpu_custom_call.1} parent=1 // pred_fallthru
      _
    // Predicated region
    $region30: #{tpu_custom_call.1} parent=1 // pred_check
      _
    $region31: #{tpu_custom_call.1} parent=1 // pred_check_branch
      %44 = sbr.rel (0) target = $region33
    $region32: #{tpu_custom_call.1} parent=1 // pred_region
      %46 = vsyncadd [#allocation10], 0
      %s48 = sshll.u32 %s7, 4
      %s49 = int_to_ptr.hbm [resolvable:$true] %s48
      %s50 = sshll.u32 [#allocation9], 4
      %s51 = int_to_ptr.vmem [resolvable:$true] %s50
      %53 = dma.hbm_to_vmem [thread:$0]  %s49, 128, %s51, [#allocation10]
    $region33: #{tpu_custom_call.1} parent=1 // pred_fallthru
      _
    // Predicated region
    $region34: #{tpu_custom_call.1} parent=1 // pred_check
      _
    $region35: #{tpu_custom_call.1} parent=1 // pred_check_branch
      %55 = sbr.rel (0) target = $region37
    $region36: #{tpu_custom_call.1} parent=1 // pred_region
      %57 = dma.done [#allocation7], 128
    $region37: #{tpu_custom_call.1} parent=1 // pred_fallthru
      _
    // Predicated region
    $region38: #{tpu_custom_call.1} parent=1 // pred_check
      _
    $region39: #{tpu_custom_call.1} parent=1 // pred_check_branch
      %59 = sbr.rel (0) target = $region41
    $region40: #{tpu_custom_call.1} parent=1 // pred_region
      %61 = dma.done [#allocation10], 128
    $region41: #{tpu_custom_call.1} parent=1 // pred_fallthru
      _
    %p62 = scmp.eq.s32.totalorder 0, 0
    // Predicated region
    $region42: #{tpu_custom_call.1} parent=1 // pred_check
      %p63 = pneg %p62
    $region43: #{tpu_custom_call.1} parent=1 // pred_check_branch
      %65 = sbr.rel (%p63) target = $region45
    $region44: #{tpu_custom_call.1} parent=1 // pred_region
      %v66 = vld [vmem:[#allocation6] sm:$0xff]
      %vm67 = vcmask 261120
      %68 = vst.msk [vmem:[#allocation4] sm:$0xff] %vm67, %v66
      %v69 = vld [vmem:[#allocation9] sm:$0xff]
      %70 = vst.msk [vmem:[#allocation5] sm:$0xff] %vm67, %v69
    $region45: #{tpu_custom_call.1} parent=1 // pred_fallthru
      _
    %v71 = vld [vmem:[%s0] sm:$0xff]
    %v72 = vld [vmem:[%s0 + $0x8] sm:$0xff]
    %v73 = vld [vmem:[%s0 + $0x10] sm:$0xff]
    %v74 = vld [vmem:[%s0 + $0x18] sm:$0xff]
    %v75 = vld [vmem:[%s0 + $0x20] sm:$0xff]
    %v76 = vld [vmem:[%s0 + $0x28] sm:$0xff]
    %v77 = vld [vmem:[%s0 + $0x30] sm:$0xff]
    %v78 = vld [vmem:[%s0 + $0x38] sm:$0xff]
    %v79 = vld [vmem:[%s1] sm:$0xff]
    %v80 = vld [vmem:[%s1 + $0x8] sm:$0xff]
    %v81 = vld [vmem:[%s3] sm:$0x1]
    %v83 = vperm.slane %v81, 0
    %vm85 = vcmask 130048
    %v87 = vsel %vm85, %v71, 0
    %v90 = vsel %vm85, %v72, 0
    %v93 = vsel %vm85, %v73, 0
    %v96 = vsel %vm85, %v74, 0
    %v99 = vsel %vm85, %v75, 0
    %v102 = vsel %vm85, %v76, 0
    %v105 = vsel %vm85, %v77, 0
    %v108 = vsel %vm85, %v78, 0
    %110 = vmatpush.msra.mxu0 0.0
    %111 = vmatpush.msra.mxu0 0.0
    %112 = vmatpush.msra.mxu0 0.0
    %113 = vmatpush.msra.mxu0 0.0
    %114 = vmatpush.msra.mxu0 0.0
    %115 = vmatpush.msra.mxu0 0.0
    %116 = vmatpush.msra.mxu0 0.0
    %117 = vmatpush.msra.mxu0 0.0
    %118 = vmatpush.msra.mxu0 0.0
    %119 = vmatpush.msra.mxu0 0.0
    %120 = vmatpush.msra.mxu0 0.0
    %121 = vmatpush.msra.mxu0 0.0
    %122 = vmatpush.msra.mxu0 0.0
    %123 = vmatpush.msra.mxu0 0.0
    %124 = vmatpush.msra.mxu0 %v80
    %125 = vmatpush.msra.mxu0 %v79
    %126 = vmatmul.f32.gmra.mxu0 %v87
    %v127 = vpop.f32.mrf.mxu0
    %v128 = vadd.f32 %v83, %v127
    %129 = vmatmul.f32.gmra.mxu0 %v90
    %v130 = vpop.f32.mrf.mxu0
    %v131 = vadd.f32 %v83, %v130
    %132 = vmatmul.f32.gmra.mxu0 %v93
    %v133 = vpop.f32.mrf.mxu0
    %v134 = vadd.f32 %v83, %v133
    %135 = vmatmul.f32.gmra.mxu0 %v96
    %v136 = vpop.f32.mrf.mxu0
    %v137 = vadd.f32 %v83, %v136
    %138 = vmatmul.f32.gmra.mxu0 %v99
    %v139 = vpop.f32.mrf.mxu0
    %v140 = vadd.f32 %v83, %v139
    %141 = vmatmul.f32.gmra.mxu0 %v102
    %v142 = vpop.f32.mrf.mxu0
    %v143 = vadd.f32 %v83, %v142
    %144 = vmatmul.f32.gmra.mxu0 %v105
    %v145 = vpop.f32.mrf.mxu0
    %v146 = vadd.f32 %v83, %v145
    %147 = vmatmul.f32.gmra.mxu0 %v108
    %v148 = vpop.f32.mrf.mxu0
    %v149 = vadd.f32 %v83, %v148
    %150 = vdwg.mxu0
    %151 = vst [vmem:[#allocation2] sm:$0xff] %v128
    %152 = vst [vmem:[#allocation2 + $0x8] sm:$0xff] %v131
    %153 = vst [vmem:[#allocation2 + $0x10] sm:$0xff] %v134
    %154 = vst [vmem:[#allocation2 + $0x18] sm:$0xff] %v137
    %155 = vst [vmem:[#allocation2 + $0x20] sm:$0xff] %v140
    %156 = vst [vmem:[#allocation2 + $0x28] sm:$0xff] %v143
    %157 = vst [vmem:[#allocation2 + $0x30] sm:$0xff] %v146
    %158 = vst [vmem:[#allocation2 + $0x38] sm:$0xff] %v149
    %v159 = vlaneseq
    %v160 = vand.u32 %v159, 127
    %vm161 = vcmp.ge.s32.totalorder %v160, 64
    %vm162 = vcmp.lt.s32.totalorder %v160, 96
    %vm163 = vmand %vm161, %vm162
    %v164 = vld [vmem:[#allocation4] sm:$0xff]
    %v165 = vld [vmem:[#allocation5] sm:$0xff]
    %v166 = vld [vmem:[#allocation2] sm:$0xff]
    %v167 = vld [vmem:[%s2] sm:$0xff]
    %v168 = vld [vmem:[%s2 + $0x8] sm:$0xff]
    %v169 = vld [vmem:[%s2 + $0x10] sm:$0xff]
    %v170 = vld [vmem:[%s2 + $0x18] sm:$0xff]
    %vm171 = vcmask 261120
    %v173 = vsel %vm171, %v164, 0
    %175 = vmatpush.msra.mxu0 0.0
    %176 = vmatpush.msra.mxu0 0.0
    %177 = vmatpush.msra.mxu0 0.0
    %178 = vmatpush.msra.mxu0 0.0
    %179 = vmatpush.msra.mxu0 0.0
    %180 = vmatpush.msra.mxu0 0.0
    %181 = vmatpush.msra.mxu0 0.0
    %182 = vmatpush.msra.mxu0 0.0
    %183 = vmatpush.msra.mxu0 0.0
    %184 = vmatpush.msra.mxu0 0.0
    %185 = vmatpush.msra.mxu0 0.0
    %186 = vmatpush.msra.mxu0 0.0
    %187 = vmatpush.msra.mxu0 %v170
    %188 = vmatpush.msra.mxu0 %v169
    %189 = vmatpush.msra.mxu0 %v168
    %190 = vmatpush.msra.mxu0 %v167
    %191 = vmatmul.f32.gmra.mxu0 %v173
    %v192 = vpop.f32.mrf.mxu0
    %v193 = vadd.f32 0.0, %v192
    %194 = vdwg.mxu0
    %v195 = vadd.f32 %v166, %v193
    %v196 = vtanh.pop %v195
    %v197 = vxor.u32 %v195, 2147483648
    %v198 = vmul.f32 %v197, 1.442695
    %v199 = vpow.pop %v198
    %v200 = vadd.f32 %v199, 1.0
    %v201 = vrcp.pop %v200
    %v202 = vmul.f32 %v200, %v201
    %v203 = vsub.f32 1.0, %v202
    %v204 = vmul.f32 %v201, %v203
    %v205 = vadd.f32 %v201, %v204
    %vm206 = vweird.f32 %v200
    %vm207 = vweird.f32 %v201
    %vm208 = vmor %vm206, %vm207
    %v209 = vsel %vm208, %v201, %v205
    %v210 = vand.u32 2147483647, %v200
    %vm211 = vcmp.eq.f32.partialorder %v210, 8.507059e+37
    %v212 = vand.u32 %v200, 2147483648
    %v213 = vor.u32 1.1754944e-38, %v212
    %v214 = vsel %vm211, %v213, %v209
    %v215 = vmul.f32 1.0, %v214
    %v216 = vsel %vm163, %v196, %v215
    %218 = vrot.lane.b32.xlu0 %v165, 32
    %v219 = vpop.permute.xlu0 %218
    %v221 = vmul.f32 %v216, %v219
    %223 = vrot.lane.b32.xlu0 %v216, 64
    %v224 = vpop.permute.xlu0 %223
    %v226 = vmul.f32 %v216, %v224
    %228 = vrot.lane.b32.xlu0 %v226, 32
    %v229 = vpop.permute.xlu0 %228
    %v231 = vadd.f32 %v221, %v229
    %v232 = vtanh.pop %v231
    %234 = vrot.lane.b32.xlu0 %v232, 64
    %v235 = vpop.permute.xlu0 %234
    %v237 = vmul.f32 %v216, %v235
    %239 = vrot.lane.b32.xlu0 %v237, 32
    %v240 = vpop.permute.xlu0 %239
    %242 = vst.msk [vmem:[#allocation3] sm:$0xff] %vm171, %v240
    %s243 = scalar_lea.vmem [#allocation2], 8
    %v244 = vld [vmem:[%s243] sm:$0xff]
    %v245 = vld [vmem:[%s2] sm:$0xff]
    %v246 = vld [vmem:[%s2 + $0x8] sm:$0xff]
    %v247 = vld [vmem:[%s2 + $0x10] sm:$0xff]
    %v248 = vld [vmem:[%s2 + $0x18] sm:$0xff]
    %v249 = vsel %vm171, %v240, 0
    %251 = vmatpush.msra.mxu0 0.0
    %252 = vmatpush.msra.mxu0 0.0
    %253 = vmatpush.msra.mxu0 0.0
    %254 = vmatpush.msra.mxu0 0.0
    %255 = vmatpush.msra.mxu0 0.0
    %256 = vmatpush.msra.mxu0 0.0
    %257 = vmatpush.msra.mxu0 0.0
    %258 = vmatpush.msra.mxu0 0.0
    %259 = vmatpush.msra.mxu0 0.0
    %260 = vmatpush.msra.mxu0 0.0
    %261 = vmatpush.msra.mxu0 0.0
    %262 = vmatpush.msra.mxu0 0.0
    %263 = vmatpush.msra.mxu0 %v248
    %264 = vmatpush.msra.mxu0 %v247
    %265 = vmatpush.msra.mxu0 %v246
    %266 = vmatpush.msra.mxu0 %v245
    %267 = vmatmul.f32.gmra.mxu0 %v249
    %v268 = vpop.f32.mrf.mxu0
    %v269 = vadd.f32 0.0, %v268
    %270 = vdwg.mxu0
    %v271 = vadd.f32 %v244, %v269
    %v272 = vtanh.pop %v271
    %v273 = vxor.u32 %v271, 2147483648
    %v274 = vmul.f32 %v273, 1.442695
    %v275 = vpow.pop %v274
    %v276 = vadd.f32 %v275, 1.0
    %v277 = vrcp.pop %v276
    %v278 = vmul.f32 %v276, %v277
    %v279 = vsub.f32 1.0, %v278
    %v280 = vmul.f32 %v277, %v279
    %v281 = vadd.f32 %v277, %v280
    %vm282 = vweird.f32 %v276
    %vm283 = vweird.f32 %v277
    %vm284 = vmor %vm282, %vm283
    %v285 = vsel %vm284, %v277, %v281
    %v286 = vand.u32 2147483647, %v276
    %vm287 = vcmp.eq.f32.partialorder %v286, 8.507059e+37
    %v288 = vand.u32 %v276, 2147483648
    %v289 = vor.u32 1.1754944e-38, %v288
    %v290 = vsel %vm287, %v289, %v285
    %v291 = vmul.f32 1.0, %v290
    %v292 = vsel %vm163, %v272, %v291
    %v293 = vmul.f32 %v292, %v231
    %295 = vrot.lane.b32.xlu0 %v292, 64
    %v296 = vpop.permute.xlu0 %295
    %v298 = vmul.f32 %v292, %v296
    %300 = vrot.lane.b32.xlu0 %v298, 32
    %v301 = vpop.permute.xlu0 %300
    %v303 = vadd.f32 %v293, %v301
    %v304 = vtanh.pop %v303
    %306 = vrot.lane.b32.xlu0 %v304, 64
    %v307 = vpop.permute.xlu0 %306
    %v309 = vmul.f32 %v292, %v307
    %311 = vrot.lane.b32.xlu0 %v309, 32
    %v312 = vpop.permute.xlu0 %311
    %s314 = scalar_lea.vmem [#allocation3], 8
    %315 = vst.msk [vmem:[%s314] sm:$0xff] %vm171, %v312
    %s316 = scalar_lea.vmem [#allocation2], 16
    %v317 = vld [vmem:[%s316] sm:$0xff]
    %v318 = vld [vmem:[%s2] sm:$0xff]
    %v319 = vld [vmem:[%s2 + $0x8] sm:$0xff]
    %v320 = vld [vmem:[%s2 + $0x10] sm:$0xff]
    %v321 = vld [vmem:[%s2 + $0x18] sm:$0xff]
    %v322 = vsel %vm171, %v312, 0
    %324 = vmatpush.msra.mxu0 0.0
    %325 = vmatpush.msra.mxu0 0.0
    %326 = vmatpush.msra.mxu0 0.0
    %327 = vmatpush.msra.mxu0 0.0
    %328 = vmatpush.msra.mxu0 0.0
    %329 = vmatpush.msra.mxu0 0.0
    %330 = vmatpush.msra.mxu0 0.0
    %331 = vmatpush.msra.mxu0 0.0
    %332 = vmatpush.msra.mxu0 0.0
    %333 = vmatpush.msra.mxu0 0.0
    %334 = vmatpush.msra.mxu0 0.0
    %335 = vmatpush.msra.mxu0 0.0
    %336 = vmatpush.msra.mxu0 %v321
    %337 = vmatpush.msra.mxu0 %v320
    %338 = vmatpush.msra.mxu0 %v319
    %339 = vmatpush.msra.mxu0 %v318
    %340 = vmatmul.f32.gmra.mxu0 %v322
    %v341 = vpop.f32.mrf.mxu0
    %v342 = vadd.f32 0.0, %v341
    %343 = vdwg.mxu0
    %v344 = vadd.f32 %v317, %v342
    %v345 = vtanh.pop %v344
    %v346 = vxor.u32 %v344, 2147483648
    %v347 = vmul.f32 %v346, 1.442695
    %v348 = vpow.pop %v347
    %v349 = vadd.f32 %v348, 1.0
    %v350 = vrcp.pop %v349
    %v351 = vmul.f32 %v349, %v350
    %v352 = vsub.f32 1.0, %v351
    %v353 = vmul.f32 %v350, %v352
    %v354 = vadd.f32 %v350, %v353
    %vm355 = vweird.f32 %v349
    %vm356 = vweird.f32 %v350
    %vm357 = vmor %vm355, %vm356
    %v358 = vsel %vm357, %v350, %v354
    %v359 = vand.u32 2147483647, %v349
    %vm360 = vcmp.eq.f32.partialorder %v359, 8.507059e+37
    %v361 = vand.u32 %v349, 2147483648
    %v362 = vor.u32 1.1754944e-38, %v361
    %v363 = vsel %vm360, %v362, %v358
    %v364 = vmul.f32 1.0, %v363
    %v365 = vsel %vm163, %v345, %v364
    %v366 = vmul.f32 %v365, %v303
    %368 = vrot.lane.b32.xlu0 %v365, 64
    %v369 = vpop.permute.xlu0 %368
    %v371 = vmul.f32 %v365, %v369
    %373 = vrot.lane.b32.xlu0 %v371, 32
    %v374 = vpop.permute.xlu0 %373
    %v376 = vadd.f32 %v366, %v374
    %v377 = vtanh.pop %v376
    %379 = vrot.lane.b32.xlu0 %v377, 64
    %v380 = vpop.permute.xlu0 %379
    %v382 = vmul.f32 %v365, %v380
    %384 = vrot.lane.b32.xlu0 %v382, 32
    %v385 = vpop.permute.xlu0 %384
    %s387 = scalar_lea.vmem [#allocation3], 16
    %388 = vst.msk [vmem:[%s387] sm:$0xff] %vm171, %v385
    %s389 = scalar_lea.vmem [#allocation2], 24
    %v390 = vld [vmem:[%s389] sm:$0xff]
    %v391 = vld [vmem:[%s2] sm:$0xff]
    %v392 = vld [vmem:[%s2 + $0x8] sm:$0xff]
    %v393 = vld [vmem:[%s2 + $0x10] sm:$0xff]
    %v394 = vld [vmem:[%s2 + $0x18] sm:$0xff]
    %v395 = vsel %vm171, %v385, 0
    %397 = vmatpush.msra.mxu0 0.0
    %398 = vmatpush.msra.mxu0 0.0
    %399 = vmatpush.msra.mxu0 0.0
    %400 = vmatpush.msra.mxu0 0.0
    %401 = vmatpush.msra.mxu0 0.0
    %402 = vmatpush.msra.mxu0 0.0
    %403 = vmatpush.msra.mxu0 0.0
    %404 = vmatpush.msra.mxu0 0.0
    %405 = vmatpush.msra.mxu0 0.0
    %406 = vmatpush.msra.mxu0 0.0
    %407 = vmatpush.msra.mxu0 0.0
    %408 = vmatpush.msra.mxu0 0.0
    %409 = vmatpush.msra.mxu0 %v394
    %410 = vmatpush.msra.mxu0 %v393
    %411 = vmatpush.msra.mxu0 %v392
    %412 = vmatpush.msra.mxu0 %v391
    %413 = vmatmul.f32.gmra.mxu0 %v395
    %v414 = vpop.f32.mrf.mxu0
    %v415 = vadd.f32 0.0, %v414
    %416 = vdwg.mxu0
    %v417 = vadd.f32 %v390, %v415
    %v418 = vtanh.pop %v417
    %v419 = vxor.u32 %v417, 2147483648
    %v420 = vmul.f32 %v419, 1.442695
    %v421 = vpow.pop %v420
    %v422 = vadd.f32 %v421, 1.0
    %v423 = vrcp.pop %v422
    %v424 = vmul.f32 %v422, %v423
    %v425 = vsub.f32 1.0, %v424
    %v426 = vmul.f32 %v423, %v425
    %v427 = vadd.f32 %v423, %v426
    %vm428 = vweird.f32 %v422
    %vm429 = vweird.f32 %v423
    %vm430 = vmor %vm428, %vm429
    %v431 = vsel %vm430, %v423, %v427
    %v432 = vand.u32 2147483647, %v422
    %vm433 = vcmp.eq.f32.partialorder %v432, 8.507059e+37
    %v434 = vand.u32 %v422, 2147483648
    %v435 = vor.u32 1.1754944e-38, %v434
    %v436 = vsel %vm433, %v435, %v431
    %v437 = vmul.f32 1.0, %v436
    %v438 = vsel %vm163, %v418, %v437
    %v439 = vmul.f32 %v438, %v376
    %441 = vrot.lane.b32.xlu0 %v438, 64
    %v442 = vpop.permute.xlu0 %441
    %v444 = vmul.f32 %v438, %v442
    %446 = vrot.lane.b32.xlu0 %v444, 32
    %v447 = vpop.permute.xlu0 %446
    %v449 = vadd.f32 %v439, %v447
    %v450 = vtanh.pop %v449
    %452 = vrot.lane.b32.xlu0 %v450, 64
    %v453 = vpop.permute.xlu0 %452
    %v455 = vmul.f32 %v438, %v453
    %457 = vrot.lane.b32.xlu0 %v455, 32
    %v458 = vpop.permute.xlu0 %457
    %s460 = scalar_lea.vmem [#allocation3], 24
    %461 = vst.msk [vmem:[%s460] sm:$0xff] %vm171, %v458
    %s462 = scalar_lea.vmem [#allocation2], 32
    %v463 = vld [vmem:[%s462] sm:$0xff]
    %v464 = vld [vmem:[%s2] sm:$0xff]
    %v465 = vld [vmem:[%s2 + $0x8] sm:$0xff]
    %v466 = vld [vmem:[%s2 + $0x10] sm:$0xff]
    %v467 = vld [vmem:[%s2 + $0x18] sm:$0xff]
    %v468 = vsel %vm171, %v458, 0
    %470 = vmatpush.msra.mxu0 0.0
    %471 = vmatpush.msra.mxu0 0.0
    %472 = vmatpush.msra.mxu0 0.0
    %473 = vmatpush.msra.mxu0 0.0
    %474 = vmatpush.msra.mxu0 0.0
    %475 = vmatpush.msra.mxu0 0.0
    %476 = vmatpush.msra.mxu0 0.0
    %477 = vmatpush.msra.mxu0 0.0
    %478 = vmatpush.msra.mxu0 0.0
    %479 = vmatpush.msra.mxu0 0.0
    %480 = vmatpush.msra.mxu0 0.0
    %481 = vmatpush.msra.mxu0 0.0
    %482 = vmatpush.msra.mxu0 %v467
    %483 = vmatpush.msra.mxu0 %v466
    %484 = vmatpush.msra.mxu0 %v465
    %485 = vmatpush.msra.mxu0 %v464
    %486 = vmatmul.f32.gmra.mxu0 %v468
    %v487 = vpop.f32.mrf.mxu0
    %v488 = vadd.f32 0.0, %v487
    %489 = vdwg.mxu0
    %v490 = vadd.f32 %v463, %v488
    %v491 = vtanh.pop %v490
    %v492 = vxor.u32 %v490, 2147483648
    %v493 = vmul.f32 %v492, 1.442695
    %v494 = vpow.pop %v493
    %v495 = vadd.f32 %v494, 1.0
    %v496 = vrcp.pop %v495
    %v497 = vmul.f32 %v495, %v496
    %v498 = vsub.f32 1.0, %v497
    %v499 = vmul.f32 %v496, %v498
    %v500 = vadd.f32 %v496, %v499
    %vm501 = vweird.f32 %v495
    %vm502 = vweird.f32 %v496
    %vm503 = vmor %vm501, %vm502
    %v504 = vsel %vm503, %v496, %v500
    %v505 = vand.u32 2147483647, %v495
    %vm506 = vcmp.eq.f32.partialorder %v505, 8.507059e+37
    %v507 = vand.u32 %v495, 2147483648
    %v508 = vor.u32 1.1754944e-38, %v507
    %v509 = vsel %vm506, %v508, %v504
    %v510 = vmul.f32 1.0, %v509
    %v511 = vsel %vm163, %v491, %v510
    %v512 = vmul.f32 %v511, %v449
    %514 = vrot.lane.b32.xlu0 %v511, 64
    %v515 = vpop.permute.xlu0 %514
    %v517 = vmul.f32 %v511, %v515
    %519 = vrot.lane.b32.xlu0 %v517, 32
    %v520 = vpop.permute.xlu0 %519
    %v522 = vadd.f32 %v512, %v520
    %v523 = vtanh.pop %v522
    %525 = vrot.lane.b32.xlu0 %v523, 64
    %v526 = vpop.permute.xlu0 %525
    %v528 = vmul.f32 %v511, %v526
    %530 = vrot.lane.b32.xlu0 %v528, 32
    %v531 = vpop.permute.xlu0 %530
    %s533 = scalar_lea.vmem [#allocation3], 32
    %534 = vst.msk [vmem:[%s533] sm:$0xff] %vm171, %v531
    %s535 = scalar_lea.vmem [#allocation2], 40
    %v536 = vld [vmem:[%s535] sm:$0xff]
    %v537 = vld [vmem:[%s2] sm:$0xff]
    %v538 = vld [vmem:[%s2 + $0x8] sm:$0xff]
    %v539 = vld [vmem:[%s2 + $0x10] sm:$0xff]
    %v540 = vld [vmem:[%s2 + $0x18] sm:$0xff]
    %v541 = vsel %vm171, %v531, 0
    %543 = vmatpush.msra.mxu0 0.0
    %544 = vmatpush.msra.mxu0 0.0
    %545 = vmatpush.msra.mxu0 0.0
    %546 = vmatpush.msra.mxu0 0.0
    %547 = vmatpush.msra.mxu0 0.0
    %548 = vmatpush.msra.mxu0 0.0
    %549 = vmatpush.msra.mxu0 0.0
    %550 = vmatpush.msra.mxu0 0.0
    %551 = vmatpush.msra.mxu0 0.0
    %552 = vmatpush.msra.mxu0 0.0
    %553 = vmatpush.msra.mxu0 0.0
    %554 = vmatpush.msra.mxu0 0.0
    %555 = vmatpush.msra.mxu0 %v540
    %556 = vmatpush.msra.mxu0 %v539
    %557 = vmatpush.msra.mxu0 %v538
    %558 = vmatpush.msra.mxu0 %v537
    %559 = vmatmul.f32.gmra.mxu0 %v541
    %v560 = vpop.f32.mrf.mxu0
    %v561 = vadd.f32 0.0, %v560
    %562 = vdwg.mxu0
    %v563 = vadd.f32 %v536, %v561
    %v564 = vtanh.pop %v563
    %v565 = vxor.u32 %v563, 2147483648
    %v566 = vmul.f32 %v565, 1.442695
    %v567 = vpow.pop %v566
    %v568 = vadd.f32 %v567, 1.0
    %v569 = vrcp.pop %v568
    %v570 = vmul.f32 %v568, %v569
    %v571 = vsub.f32 1.0, %v570
    %v572 = vmul.f32 %v569, %v571
    %v573 = vadd.f32 %v569, %v572
    %vm574 = vweird.f32 %v568
    %vm575 = vweird.f32 %v569
    %vm576 = vmor %vm574, %vm575
    %v577 = vsel %vm576, %v569, %v573
    %v578 = vand.u32 2147483647, %v568
    %vm579 = vcmp.eq.f32.partialorder %v578, 8.507059e+37
    %v580 = vand.u32 %v568, 2147483648
    %v581 = vor.u32 1.1754944e-38, %v580
    %v582 = vsel %vm579, %v581, %v577
    %v583 = vmul.f32 1.0, %v582
    %v584 = vsel %vm163, %v564, %v583
    %v585 = vmul.f32 %v584, %v522
    %587 = vrot.lane.b32.xlu0 %v584, 64
    %v588 = vpop.permute.xlu0 %587
    %v590 = vmul.f32 %v584, %v588
    %592 = vrot.lane.b32.xlu0 %v590, 32
    %v593 = vpop.permute.xlu0 %592
    %v595 = vadd.f32 %v585, %v593
    %v596 = vtanh.pop %v595
    %598 = vrot.lane.b32.xlu0 %v596, 64
    %v599 = vpop.permute.xlu0 %598
    %v601 = vmul.f32 %v584, %v599
    %603 = vrot.lane.b32.xlu0 %v601, 32
    %v604 = vpop.permute.xlu0 %603
    %s606 = scalar_lea.vmem [#allocation3], 40
    %607 = vst.msk [vmem:[%s606] sm:$0xff] %vm171, %v604
    %s608 = scalar_lea.vmem [#allocation2], 48
    %v609 = vld [vmem:[%s608] sm:$0xff]
    %v610 = vld [vmem:[%s2] sm:$0xff]
    %v611 = vld [vmem:[%s2 + $0x8] sm:$0xff]
    %v612 = vld [vmem:[%s2 + $0x10] sm:$0xff]
    %v613 = vld [vmem:[%s2 + $0x18] sm:$0xff]
    %v614 = vsel %vm171, %v604, 0
    %616 = vmatpush.msra.mxu0 0.0
    %617 = vmatpush.msra.mxu0 0.0
    %618 = vmatpush.msra.mxu0 0.0
    %619 = vmatpush.msra.mxu0 0.0
    %620 = vmatpush.msra.mxu0 0.0
    %621 = vmatpush.msra.mxu0 0.0
    %622 = vmatpush.msra.mxu0 0.0
    %623 = vmatpush.msra.mxu0 0.0
    %624 = vmatpush.msra.mxu0 0.0
    %625 = vmatpush.msra.mxu0 0.0
    %626 = vmatpush.msra.mxu0 0.0
    %627 = vmatpush.msra.mxu0 0.0
    %628 = vmatpush.msra.mxu0 %v613
    %629 = vmatpush.msra.mxu0 %v612
    %630 = vmatpush.msra.mxu0 %v611
    %631 = vmatpush.msra.mxu0 %v610
    %632 = vmatmul.f32.gmra.mxu0 %v614
    %v633 = vpop.f32.mrf.mxu0
    %v634 = vadd.f32 0.0, %v633
    %635 = vdwg.mxu0
    %v636 = vadd.f32 %v609, %v634
    %v637 = vtanh.pop %v636
    %v638 = vxor.u32 %v636, 2147483648
    %v639 = vmul.f32 %v638, 1.442695
    %v640 = vpow.pop %v639
    %v641 = vadd.f32 %v640, 1.0
    %v642 = vrcp.pop %v641
    %v643 = vmul.f32 %v641, %v642
    %v644 = vsub.f32 1.0, %v643
    %v645 = vmul.f32 %v642, %v644
    %v646 = vadd.f32 %v642, %v645
    %vm647 = vweird.f32 %v641
    %vm648 = vweird.f32 %v642
    %vm649 = vmor %vm647, %vm648
    %v650 = vsel %vm649, %v642, %v646
    %v651 = vand.u32 2147483647, %v641
    %vm652 = vcmp.eq.f32.partialorder %v651, 8.507059e+37
    %v653 = vand.u32 %v641, 2147483648
    %v654 = vor.u32 1.1754944e-38, %v653
    %v655 = vsel %vm652, %v654, %v650
    %v656 = vmul.f32 1.0, %v655
    %v657 = vsel %vm163, %v637, %v656
    %v658 = vmul.f32 %v657, %v595
    %660 = vrot.lane.b32.xlu0 %v657, 64
    %v661 = vpop.permute.xlu0 %660
    %v663 = vmul.f32 %v657, %v661
    %665 = vrot.lane.b32.xlu0 %v663, 32
    %v666 = vpop.permute.xlu0 %665
    %v668 = vadd.f32 %v658, %v666
    %v669 = vtanh.pop %v668
    %671 = vrot.lane.b32.xlu0 %v669, 64
    %v672 = vpop.permute.xlu0 %671
    %v674 = vmul.f32 %v657, %v672
    %676 = vrot.lane.b32.xlu0 %v674, 32
    %v677 = vpop.permute.xlu0 %676
    %s679 = scalar_lea.vmem [#allocation3], 48
    %680 = vst.msk [vmem:[%s679] sm:$0xff] %vm171, %v677
    %s681 = scalar_lea.vmem [#allocation2], 56
    %v682 = vld [vmem:[%s681] sm:$0xff]
    %v683 = vld [vmem:[%s2] sm:$0xff]
    %v684 = vld [vmem:[%s2 + $0x8] sm:$0xff]
    %v685 = vld [vmem:[%s2 + $0x10] sm:$0xff]
    %v686 = vld [vmem:[%s2 + $0x18] sm:$0xff]
    %v687 = vsel %vm171, %v677, 0
    %689 = vmatpush.msra.mxu0 0.0
    %690 = vmatpush.msra.mxu0 0.0
    %691 = vmatpush.msra.mxu0 0.0
    %692 = vmatpush.msra.mxu0 0.0
    %693 = vmatpush.msra.mxu0 0.0
    %694 = vmatpush.msra.mxu0 0.0
    %695 = vmatpush.msra.mxu0 0.0
    %696 = vmatpush.msra.mxu0 0.0
    %697 = vmatpush.msra.mxu0 0.0
    %698 = vmatpush.msra.mxu0 0.0
    %699 = vmatpush.msra.mxu0 0.0
    %700 = vmatpush.msra.mxu0 0.0
    %701 = vmatpush.msra.mxu0 %v686
    %702 = vmatpush.msra.mxu0 %v685
    %703 = vmatpush.msra.mxu0 %v684
    %704 = vmatpush.msra.mxu0 %v683
    %705 = vmatmul.f32.gmra.mxu0 %v687
    %v706 = vpop.f32.mrf.mxu0
    %v707 = vadd.f32 0.0, %v706
    %708 = vdwg.mxu0
    %v709 = vadd.f32 %v682, %v707
    %v710 = vtanh.pop %v709
    %v711 = vxor.u32 %v709, 2147483648
    %v712 = vmul.f32 %v711, 1.442695
    %v713 = vpow.pop %v712
    %v714 = vadd.f32 %v713, 1.0
    %v715 = vrcp.pop %v714
    %v716 = vmul.f32 %v714, %v715
    %v717 = vsub.f32 1.0, %v716
    %v718 = vmul.f32 %v715, %v717
    %v719 = vadd.f32 %v715, %v718
    %vm720 = vweird.f32 %v714
    %vm721 = vweird.f32 %v715
    %vm722 = vmor %vm720, %vm721
    %v723 = vsel %vm722, %v715, %v719
    %v724 = vand.u32 2147483647, %v714
    %vm725 = vcmp.eq.f32.partialorder %v724, 8.507059e+37
    %v726 = vand.u32 %v714, 2147483648
    %v727 = vor.u32 1.1754944e-38, %v726
    %v728 = vsel %vm725, %v727, %v723
    %v729 = vmul.f32 1.0, %v728
    %v730 = vsel %vm163, %v710, %v729
    %v731 = vmul.f32 %v730, %v668
    %733 = vrot.lane.b32.xlu0 %v730, 64
    %v734 = vpop.permute.xlu0 %733
    %v736 = vmul.f32 %v730, %v734
    %738 = vrot.lane.b32.xlu0 %v736, 32
    %v739 = vpop.permute.xlu0 %738
    %v741 = vadd.f32 %v731, %v739
    %v742 = vtanh.pop %v741
    %744 = vrot.lane.b32.xlu0 %v742, 64
    %v745 = vpop.permute.xlu0 %744
    %v747 = vmul.f32 %v730, %v745
    %749 = vrot.lane.b32.xlu0 %v747, 32
    %v750 = vpop.permute.xlu0 %749
    %s752 = scalar_lea.vmem [#allocation3], 56
    %753 = vst.msk [vmem:[%s752] sm:$0xff] %vm171, %v750
    %754 = vst.msk [vmem:[#allocation4] sm:$0xff] %vm171, %v750
    %756 = vrot.lane.b32.xlu0 %v741, 96
    %v757 = vpop.permute.xlu0 %756
    %759 = vst.msk [vmem:[#allocation5] sm:$0xff] %vm171, %v757
    %760 = vst.msk [vmem:[#allocation12] sm:$0xff] %vm171, %v750
    %761 = vst.msk [vmem:[#allocation14] sm:$0xff] %vm171, %v757
    %v762 = vld [vmem:[#allocation3] sm:$0xff]
    %v763 = vld [vmem:[#allocation3 + $0x8] sm:$0xff]
    %v764 = vld [vmem:[#allocation3 + $0x10] sm:$0xff]
    %v765 = vld [vmem:[#allocation3 + $0x18] sm:$0xff]
    %v766 = vld [vmem:[#allocation3 + $0x20] sm:$0xff]
    %v767 = vld [vmem:[#allocation3 + $0x28] sm:$0xff]
    %v768 = vld [vmem:[#allocation3 + $0x30] sm:$0xff]
    %v769 = vld [vmem:[#allocation3 + $0x38] sm:$0xff]
    %v770 = vld [vmem:[%s4] sm:$0xff]
    %v771 = vld [vmem:[%s4 + $0x8] sm:$0xff]
    %v772 = vld [vmem:[%s4 + $0x10] sm:$0xff]
    %v773 = vld [vmem:[%s4 + $0x18] sm:$0xff]
    %v774 = vld [vmem:[%s5] sm:$0x1]
    %v776 = vperm.slane %v774, 0
    %v779 = vsel %vm171, %v762, 0
    %v782 = vsel %vm171, %v763, 0
    %v785 = vsel %vm171, %v764, 0
    %v788 = vsel %vm171, %v765, 0
    %v791 = vsel %vm171, %v766, 0
    %v794 = vsel %vm171, %v767, 0
    %v797 = vsel %vm171, %v768, 0
    %v800 = vsel %vm171, %v769, 0
    %802 = vmatpush.msra.mxu0 0.0
    %803 = vmatpush.msra.mxu0 0.0
    %804 = vmatpush.msra.mxu0 0.0
    %805 = vmatpush.msra.mxu0 0.0
    %806 = vmatpush.msra.mxu0 0.0
    %807 = vmatpush.msra.mxu0 0.0
    %808 = vmatpush.msra.mxu0 0.0
    %809 = vmatpush.msra.mxu0 0.0
    %810 = vmatpush.msra.mxu0 0.0
    %811 = vmatpush.msra.mxu0 0.0
    %812 = vmatpush.msra.mxu0 0.0
    %813 = vmatpush.msra.mxu0 0.0
    %814 = vmatpush.msra.mxu0 %v773
    %815 = vmatpush.msra.mxu0 %v772
    %816 = vmatpush.msra.mxu0 %v771
    %817 = vmatpush.msra.mxu0 %v770
    %818 = vmatmul.f32.gmra.mxu0 %v779
    %v819 = vpop.f32.mrf.mxu0
    %v820 = vadd.f32 %v776, %v819
    %821 = vmatmul.f32.gmra.mxu0 %v782
    %v822 = vpop.f32.mrf.mxu0
    %v823 = vadd.f32 %v776, %v822
    %824 = vmatmul.f32.gmra.mxu0 %v785
    %v825 = vpop.f32.mrf.mxu0
    %v826 = vadd.f32 %v776, %v825
    %827 = vmatmul.f32.gmra.mxu0 %v788
    %v828 = vpop.f32.mrf.mxu0
    %v829 = vadd.f32 %v776, %v828
    %830 = vmatmul.f32.gmra.mxu0 %v791
    %v831 = vpop.f32.mrf.mxu0
    %v832 = vadd.f32 %v776, %v831
    %833 = vmatmul.f32.gmra.mxu0 %v794
    %v834 = vpop.f32.mrf.mxu0
    %v835 = vadd.f32 %v776, %v834
    %836 = vmatmul.f32.gmra.mxu0 %v797
    %v837 = vpop.f32.mrf.mxu0
    %v838 = vadd.f32 %v776, %v837
    %839 = vmatmul.f32.gmra.mxu0 %v800
    %v840 = vpop.f32.mrf.mxu0
    %v841 = vadd.f32 %v776, %v840
    %842 = vdwg.mxu0
    %843 = vst [vmem:[#allocation11] sm:$0xff] %v820
    %844 = vst [vmem:[#allocation11 + $0x8] sm:$0xff] %v823
    %845 = vst [vmem:[#allocation11 + $0x10] sm:$0xff] %v826
    %846 = vst [vmem:[#allocation11 + $0x18] sm:$0xff] %v829
    %847 = vst [vmem:[#allocation11 + $0x20] sm:$0xff] %v832
    %848 = vst [vmem:[#allocation11 + $0x28] sm:$0xff] %v835
    %849 = vst [vmem:[#allocation11 + $0x30] sm:$0xff] %v838
    %850 = vst [vmem:[#allocation11 + $0x38] sm:$0xff] %v841
    // Predicated region
    $region46: #{tpu_custom_call.1} parent=1 // pred_check
      _
    $region47: #{tpu_custom_call.1} parent=1 // pred_check_branch
      %852 = sbr.rel (0) target = $region49
    $region48: #{tpu_custom_call.1} parent=1 // pred_region
      %854 = vsyncadd [#allocation8], 0
      %s855 = sshll.u32 [#allocation11], 4
      %s856 = int_to_ptr.vmem [resolvable:$true] %s855
      %s857 = sshll.u32 %s8, 4
      %s858 = int_to_ptr.hbm [resolvable:$true] %s857
      %863 = dma.vmem_to_hbm [thread:$0]  %s856, 1024, %s858, [#allocation8], 128, 128, 8
    $region49: #{tpu_custom_call.1} parent=1 // pred_fallthru
      _
    // Predicated region
    $region50: #{tpu_custom_call.1} parent=1 // pred_check
      _
    $region51: #{tpu_custom_call.1} parent=1 // pred_check_branch
      %865 = sbr.rel (0) target = $region53
    $region52: #{tpu_custom_call.1} parent=1 // pred_region
      %867 = vsyncadd [#allocation13], 0
      %s869 = sshll.u32 [#allocation12], 4
      %s870 = int_to_ptr.vmem [resolvable:$true] %s869
      %s871 = sshll.u32 %s9, 4
      %s872 = int_to_ptr.hbm [resolvable:$true] %s871
      %874 = dma.vmem_to_hbm [thread:$0]  %s870, 128, %s872, [#allocation13]
    $region53: #{tpu_custom_call.1} parent=1 // pred_fallthru
      _
    // Predicated region
    $region54: #{tpu_custom_call.1} parent=1 // pred_check
      _
    $region55: #{tpu_custom_call.1} parent=1 // pred_check_branch
      %876 = sbr.rel (0) target = $region57
    $region56: #{tpu_custom_call.1} parent=1 // pred_region
      %878 = vsyncadd [#allocation13], 0
      %s880 = sshll.u32 [#allocation14], 4
      %s881 = int_to_ptr.vmem [resolvable:$true] %s880
      %s882 = sshll.u32 %s10, 4
      %s883 = int_to_ptr.hbm [resolvable:$true] %s882
      %885 = dma.vmem_to_hbm [thread:$0]  %s881, 128, %s883, [#allocation13]
    $region57: #{tpu_custom_call.1} parent=1 // pred_fallthru
      _
    // Predicated region
    $region58: #{tpu_custom_call.1} parent=1 // pred_check
      _
    $region59: #{tpu_custom_call.1} parent=1 // pred_check_branch
      %887 = sbr.rel (0) target = $region61
    $region60: #{tpu_custom_call.1} parent=1 // pred_region
      %889 = dma.done [#allocation8], 1024
    $region61: #{tpu_custom_call.1} parent=1 // pred_fallthru
      _
    // Predicated region
    $region62: #{tpu_custom_call.1} parent=1 // pred_check
      _
    $region63: #{tpu_custom_call.1} parent=1 // pred_check_branch
      %891 = sbr.rel (0) target = $region65
    $region64: #{tpu_custom_call.1} parent=1 // pred_region
      %893 = dma.done [#allocation13], 128
    $region65: #{tpu_custom_call.1} parent=1 // pred_fallthru
      _
    // Predicated region
    $region66: #{tpu_custom_call.1} parent=1 // pred_check
      _
    $region67: #{tpu_custom_call.1} parent=1 // pred_check_branch
      %895 = sbr.rel (0) target = $region69
    $region68: #{tpu_custom_call.1} parent=1 // pred_region
      %897 = dma.done [#allocation13], 128
    $region69: #{tpu_custom_call.1} parent=1 // pred_fallthru
      _
    %898 = vsyncpa [#allocation7], 1
    %899 = vsyncpa [#allocation10], 1
    %900 = vsyncpa [#allocation8], 1
    %901 = vsyncpa [#allocation13], 1

</llo_original>
